<compile_context>
chip_gen: v6e
topology: v6e:2x2x1
jax: 0.10.0
libtpu: 0.0.40
codegen_flags: <defaults>
</compile_context>

<pallas_src>
import math
import jax
import jax.numpy as jnp
from jax.experimental import pallas as pl
from jax.experimental.pallas import tpu as pltpu

# ---------------- model hyper-params (small, consistent with the module) ----
NUM_TOKEN  = 32      # vocab size (V)
NUM_INPUTS = 32      # d_model (E)
NUM_HEADS  = 2       # H
NUM_HIDDEN = 64      # feed-forward hidden (F)
NUM_LAYERS = 2       # L
SEQ_LEN    = 8       # S
BATCH      = 2       # N
HEAD_DIM   = NUM_INPUTS // NUM_HEADS
LN_EPS     = 1e-5


# ---------------- fused forward kernel (one batch element per grid step) ----
def _fused_forward_kernel(ids_ref, emb_ref, pe_ref,
                          wqkv_ref, bqkv_ref, wo_ref, bo_ref,
                          w1_ref, b1_ref, w2_ref, b2_ref,
                          ln1g_ref, ln1b_ref, ln2g_ref, ln2b_ref,
                          wdec_ref, bdec_ref, out_ref):
    S = pe_ref.shape[0]
    V, E = emb_ref.shape
    L = wqkv_ref.shape[0]
    H, Dh = NUM_HEADS, HEAD_DIM

    # ---- embedding lookup as a gather-free one-hot matmul (MXU) ----
    ids = ids_ref[0]                                              # (S, 1) int32
    vocab_iota = jax.lax.broadcasted_iota(jnp.int32, (S, V), 1)
    onehot = (ids == vocab_iota).astype(jnp.float32)              # (S, V)
    x = jnp.dot(onehot, emb_ref[...], preferred_element_type=jnp.float32)

    # ---- scale + positional encoding (fused, no extra pallas_call) ----
    x = x * math.sqrt(E) + pe_ref[...]                            # (S, E)
    # TODO(synk): dropout omitted (eval-mode forward semantics).

    # ---- causal additive mask, built in-kernel (no HBM input) ----
    row = jax.lax.broadcasted_iota(jnp.int32, (S, S), 0)
    col = jax.lax.broadcasted_iota(jnp.int32, (S, S), 1)
    mask = jnp.where(row >= col, 0.0, -1e30).astype(jnp.float32)  # (S, S)

    scale = 1.0 / math.sqrt(Dh)

    def layernorm(z, g, b):
        mean = jnp.mean(z, axis=-1, keepdims=True)
        var = jnp.mean(jnp.square(z - mean), axis=-1, keepdims=True)
        return (z - mean) * jax.lax.rsqrt(var + LN_EPS) * g + b

    # static unroll over the 2 encoder layers; weights indexed by static l
    for l in range(L):
        # ---- self-attention (all heads in one invocation) ----
        qkv = (jnp.dot(x, wqkv_ref[l], preferred_element_type=jnp.float32)
               + bqkv_ref[l])                                     # (S, 3E)
        q = qkv[:, :E] * scale          # fold 1/sqrt(Dh) into q
        k = qkv[:, E:2 * E]
        v = qkv[:, 2 * E:]

        per_head = []
        for h in range(H):              # static in-register head slices
            c0 = h * Dh
            qh = q[:, c0:c0 + Dh]
            kh = k[:, c0:c0 + Dh]
            vh = v[:, c0:c0 + Dh]
            s_hh = jnp.dot(qh, kh.T,
                           preferred_element_type=jnp.float32) + mask  # (S, S)
            mx = jnp.max(s_hh, axis=-1, keepdims=True)
            p = jnp.exp(s_hh - mx)
            p = p * pl.reciprocal(jnp.sum(p, axis=-1, keepdims=True),
                                  approx=True)
            per_head.append(jnp.dot(p, vh,
                                    preferred_element_type=jnp.float32))
        attn = jnp.concatenate(per_head, axis=1)                  # (S, E)
        attn = (jnp.dot(attn, wo_ref[l], preferred_element_type=jnp.float32)
                + bo_ref[l])

        # residual + LayerNorm 1 (post-LN, matches norm_first=False)
        x = layernorm(x + attn, ln1g_ref[l], ln1b_ref[l])

        # ---- feed-forward (ReLU) ----
        h1 = jnp.maximum(
            jnp.dot(x, w1_ref[l], preferred_element_type=jnp.float32)
            + b1_ref[l], 0.0)
        ff = (jnp.dot(h1, w2_ref[l], preferred_element_type=jnp.float32)
              + b2_ref[l])

        # residual + LayerNorm 2
        x = layernorm(x + ff, ln2g_ref[l], ln2b_ref[l])

    # ---- decoder linear ----
    out_ref[0] = (jnp.dot(x, wdec_ref[...],
                          preferred_element_type=jnp.float32) + bdec_ref[...])


# ---------------- parameter init (pre-transposed / layer-stacked) -----------
def init_params(key):
    E, V, F, L = NUM_INPUTS, NUM_TOKEN, NUM_HIDDEN, NUM_LAYERS
    rng = 0.12
    xav = 1.0 / math.sqrt(E)
    hid = 1.0 / math.sqrt(F)
    keys = jax.random.split(key, 2 + 4 * L)

    # weights are stored already transposed (K, N_out) so no .T per forward
    wqkv = jnp.stack([jax.random.uniform(keys[2 + 4 * l + 0], (E, 3 * E),
                                         jnp.float32, -xav, xav)
                      for l in range(L)])
    wo = jnp.stack([jax.random.uniform(keys[2 + 4 * l + 1], (E, E),
                                       jnp.float32, -xav, xav)
                    for l in range(L)])
    w1 = jnp.stack([jax.random.uniform(keys[2 + 4 * l + 2], (E, F),
                                       jnp.float32, -xav, xav)
                    for l in range(L)])
    w2 = jnp.stack([jax.random.uniform(keys[2 + 4 * l + 3], (F, E),
                                       jnp.float32, -hid, hid)
                    for l in range(L)])

    return {
        "emb": jax.random.uniform(keys[0], (V, E), jnp.float32, -rng, rng),
        "wdec": jax.random.uniform(keys[1], (V, E), jnp.float32,
                                   -rng, rng).T,            # stored (E, V)
        "bdec": jnp.zeros((1, V), jnp.float32),
        "wqkv": wqkv, "bqkv": jnp.zeros((L, 1, 3 * E), jnp.float32),
        "wo": wo,     "bo":   jnp.zeros((L, 1, E), jnp.float32),
        "w1": w1,     "b1":   jnp.zeros((L, 1, F), jnp.float32),
        "w2": w2,     "b2":   jnp.zeros((L, 1, E), jnp.float32),
        "ln1_g": jnp.ones((L, 1, E), jnp.float32),
        "ln1_b": jnp.zeros((L, 1, E), jnp.float32),
        "ln2_g": jnp.ones((L, 1, E), jnp.float32),
        "ln2_b": jnp.zeros((L, 1, E), jnp.float32),
    }


def positional_encoding(S, E):
    pos = jnp.arange(S, dtype=jnp.float32)[:, None]
    divider = jnp.exp(jnp.arange(0, E, 2, dtype=jnp.float32)
                      * (-math.log(10000.0) / E))
    pe = jnp.zeros((S, E), jnp.float32)
    pe = pe.at[:, 0::2].set(jnp.sin(pos * divider))
    pe = pe.at[:, 1::2].set(jnp.cos(pos * divider))
    return pe


# ---------------- forward pass: ONE pallas_call for the whole model ---------
def transformer_forward(params, source):
    S, N = source.shape
    E, V, F, L = NUM_INPUTS, NUM_TOKEN, NUM_HIDDEN, NUM_LAYERS

    ids = source.T.reshape(N, S, 1).astype(jnp.int32)   # batch-major tokens
    pe = positional_encoding(S, E)                       # (S, E) constant

    out = pl.pallas_call(
        _fused_forward_kernel,
        out_shape=jax.ShapeDtypeStruct((N, S, V), jnp.float32),
        grid=(N,),
        in_specs=[
            pl.BlockSpec((1, S, 1),     lambda n: (n, 0, 0)),   # ids
            pl.BlockSpec((V, E),        lambda n: (0, 0)),      # emb table
            pl.BlockSpec((S, E),        lambda n: (0, 0)),      # pos enc
            pl.BlockSpec((L, E, 3 * E), lambda n: (0, 0, 0)),   # wqkv
            pl.BlockSpec((L, 1, 3 * E), lambda n: (0, 0, 0)),   # bqkv
            pl.BlockSpec((L, E, E),     lambda n: (0, 0, 0)),   # wo
            pl.BlockSpec((L, 1, E),     lambda n: (0, 0, 0)),   # bo
            pl.BlockSpec((L, E, F),     lambda n: (0, 0, 0)),   # w1
            pl.BlockSpec((L, 1, F),     lambda n: (0, 0, 0)),   # b1
            pl.BlockSpec((L, F, E),     lambda n: (0, 0, 0)),   # w2
            pl.BlockSpec((L, 1, E),     lambda n: (0, 0, 0)),   # b2
            pl.BlockSpec((L, 1, E),     lambda n: (0, 0, 0)),   # ln1_g
            pl.BlockSpec((L, 1, E),     lambda n: (0, 0, 0)),   # ln1_b
            pl.BlockSpec((L, 1, E),     lambda n: (0, 0, 0)),   # ln2_g
            pl.BlockSpec((L, 1, E),     lambda n: (0, 0, 0)),   # ln2_b
            pl.BlockSpec((E, V),        lambda n: (0, 0)),      # wdec
            pl.BlockSpec((1, V),        lambda n: (0, 0)),      # bdec
        ],
        out_specs=pl.BlockSpec((1, S, V), lambda n: (n, 0, 0)),
        compiler_params=pltpu.CompilerParams(
            dimension_semantics=("parallel",)),   # batches -> both TCs on v7x
    )(ids, params["emb"], pe,
      params["wqkv"], params["bqkv"], params["wo"], params["bo"],
      params["w1"], params["b1"], params["w2"], params["b2"],
      params["ln1_g"], params["ln1_b"], params["ln2_g"], params["ln2_b"],
      params["wdec"], params["bdec"])

    # (N, S, V) -> (S, N, V) to match the PyTorch seq-first layout
    return out.transpose(1, 0, 2)


# ---------------- main -------------------------------------------------------
if __name__ == "__main__":
    key = jax.random.PRNGKey(0)
    pkey, dkey = jax.random.split(key)
    params = init_params(pkey)
    source = jax.random.randint(dkey, (SEQ_LEN, BATCH), 0, NUM_TOKEN,
                                dtype=jnp.int32)

    out = jax.jit(transformer_forward)(params, source)
    out = jax.block_until_ready(out)

    assert out.shape == (SEQ_LEN, BATCH, NUM_TOKEN)
    assert bool(jnp.all(jnp.isfinite(out)))
    print("KERNEL_OK")
</pallas_src>

<mosaic_0001>
module attributes {stable_mosaic.version = 11 : i64} {
  func.func @_fused_forward_kernel(%arg0: i32, %arg1: memref<1x8x1xi32, #tpu.memory_space<vmem>>, %arg2: memref<32x32xf32, #tpu.memory_space<vmem>>, %arg3: memref<8x32xf32, #tpu.memory_space<vmem>>, %arg4: memref<2x32x96xf32, #tpu.memory_space<vmem>>, %arg5: memref<2x1x96xf32, #tpu.memory_space<vmem>>, %arg6: memref<2x32x32xf32, #tpu.memory_space<vmem>>, %arg7: memref<2x1x32xf32, #tpu.memory_space<vmem>>, %arg8: memref<2x32x64xf32, #tpu.memory_space<vmem>>, %arg9: memref<2x1x64xf32, #tpu.memory_space<vmem>>, %arg10: memref<2x64x32xf32, #tpu.memory_space<vmem>>, %arg11: memref<2x1x32xf32, #tpu.memory_space<vmem>>, %arg12: memref<2x1x32xf32, #tpu.memory_space<vmem>>, %arg13: memref<2x1x32xf32, #tpu.memory_space<vmem>>, %arg14: memref<2x1x32xf32, #tpu.memory_space<vmem>>, %arg15: memref<2x1x32xf32, #tpu.memory_space<vmem>>, %arg16: memref<32x32xf32, #tpu.memory_space<vmem>>, %arg17: memref<1x32xf32, #tpu.memory_space<vmem>>, %arg18: memref<1x8x32xf32, #tpu.memory_space<vmem>>) attributes {dimension_semantics = [#tpu.dimension_semantics<parallel>], iteration_bounds = array<i64: 2>, scalar_prefetch = 0 : i64, scratch_operands = 0 : i64, tpu.core_type = #tpu.core_type<tc>, window_params = [{transform_indices = @transform_0, window_bounds = array<i64: 1, 8, 1>}, {pipeline_mode = #tpu.pipeline_mode<synchronous>, transform_indices = @transform_1, window_bounds = array<i64: 32, 32>}, {pipeline_mode = #tpu.pipeline_mode<synchronous>, transform_indices = @transform_2, window_bounds = array<i64: 8, 32>}, {pipeline_mode = #tpu.pipeline_mode<synchronous>, transform_indices = @transform_3, window_bounds = array<i64: 2, 32, 96>}, {pipeline_mode = #tpu.pipeline_mode<synchronous>, transform_indices = @transform_4, window_bounds = array<i64: 2, 1, 96>}, {pipeline_mode = #tpu.pipeline_mode<synchronous>, transform_indices = @transform_5, window_bounds = array<i64: 2, 32, 32>}, {pipeline_mode = #tpu.pipeline_mode<synchronous>, transform_indices = @transform_6, window_bounds = array<i64: 2, 1, 32>}, {pipeline_mode = #tpu.pipeline_mode<synchronous>, transform_indices = @transform_7, window_bounds = array<i64: 2, 32, 64>}, {pipeline_mode = #tpu.pipeline_mode<synchronous>, transform_indices = @transform_8, window_bounds = array<i64: 2, 1, 64>}, {pipeline_mode = #tpu.pipeline_mode<synchronous>, transform_indices = @transform_9, window_bounds = array<i64: 2, 64, 32>}, {pipeline_mode = #tpu.pipeline_mode<synchronous>, transform_indices = @transform_10, window_bounds = array<i64: 2, 1, 32>}, {pipeline_mode = #tpu.pipeline_mode<synchronous>, transform_indices = @transform_11, window_bounds = array<i64: 2, 1, 32>}, {pipeline_mode = #tpu.pipeline_mode<synchronous>, transform_indices = @transform_12, window_bounds = array<i64: 2, 1, 32>}, {pipeline_mode = #tpu.pipeline_mode<synchronous>, transform_indices = @transform_13, window_bounds = array<i64: 2, 1, 32>}, {pipeline_mode = #tpu.pipeline_mode<synchronous>, transform_indices = @transform_14, window_bounds = array<i64: 2, 1, 32>}, {pipeline_mode = #tpu.pipeline_mode<synchronous>, transform_indices = @transform_15, window_bounds = array<i64: 32, 32>}, {pipeline_mode = #tpu.pipeline_mode<synchronous>, transform_indices = @transform_16, window_bounds = array<i64: 1, 32>}, {transform_indices = @transform_17, window_bounds = array<i64: 1, 8, 32>}]} {
    %c0 = arith.constant 0 : index
    %c0_0 = arith.constant 0 : index
    %c0_1 = arith.constant 0 : index
    %0 = vector.load %arg1[%c0, %c0_0, %c0_1] : memref<1x8x1xi32, #tpu.memory_space<vmem>>, vector<1x8x1xi32>
    %1 = vector.shape_cast %0 : vector<1x8x1xi32> to vector<8x1xi32>
    %2 = tpu.iota {dimensions = array<i32: 1>} : vector<8x32xi32>
    %3 = vector.broadcast %1 : vector<8x1xi32> to vector<8x32xi32>
    %4 = arith.cmpi eq, %3, %2 : vector<8x32xi32>
    %5 = arith.extui %4 : vector<8x32xi1> to vector<8x32xi32>
    %6 = arith.sitofp %5 : vector<8x32xi32> to vector<8x32xf32>
    %c0_2 = arith.constant 0 : index
    %c0_3 = arith.constant 0 : index
    %7 = vector.load %arg2[%c0_2, %c0_3] : memref<32x32xf32, #tpu.memory_space<vmem>>, vector<32x32xf32>
    %cst = arith.constant dense<0.000000e+00> : vector<8x32xf32>
    %8 = tpu.matmul %6, %7, %cst {dimension_numbers = #tpu.dot_dimension_numbers<[1], [0], [0], [1], [0, 0, 1, 1], [], []>} : vector<8x32xf32>, vector<32x32xf32>, vector<8x32xf32> -> vector<8x32xf32>
    %cst_4 = arith.constant 5.65685415 : f32
    %9 = vector.broadcast %cst_4 : f32 to vector<8x32xf32>
    %10 = arith.mulf %8, %9 : vector<8x32xf32>
    %c0_5 = arith.constant 0 : index
    %c0_6 = arith.constant 0 : index
    %11 = vector.load %arg3[%c0_5, %c0_6] : memref<8x32xf32, #tpu.memory_space<vmem>>, vector<8x32xf32>
    %12 = arith.addf %10, %11 : vector<8x32xf32>
    %13 = tpu.iota {dimensions = array<i32: 0>} : vector<8x8xi32>
    %14 = tpu.iota {dimensions = array<i32: 1>} : vector<8x8xi32>
    %15 = arith.cmpi sge, %13, %14 : vector<8x8xi32>
    %cst_7 = arith.constant 0.000000e+00 : f32
    %cst_8 = arith.constant -1.000000e+30 : f32
    %16 = vector.broadcast %cst_7 : f32 to vector<8x8xf32>
    %17 = vector.broadcast %cst_8 : f32 to vector<8x8xf32>
    %18 = arith.select %15, %16, %17 : vector<8x8xi1>, vector<8x8xf32>
    %c0_9 = arith.constant 0 : index
    %c0_10 = arith.constant 0 : index
    %c0_11 = arith.constant 0 : index
    %19 = vector.load %arg4[%c0_9, %c0_10, %c0_11] : memref<2x32x96xf32, #tpu.memory_space<vmem>>, vector<1x32x96xf32>
    %20 = vector.shape_cast %19 : vector<1x32x96xf32> to vector<32x96xf32>
    %cst_12 = arith.constant dense<0.000000e+00> : vector<8x96xf32>
    %21 = tpu.matmul %12, %20, %cst_12 {dimension_numbers = #tpu.dot_dimension_numbers<[1], [0], [0], [1], [0, 0, 1, 1], [], []>} : vector<8x32xf32>, vector<32x96xf32>, vector<8x96xf32> -> vector<8x96xf32>
    %c0_13 = arith.constant 0 : index
    %c0_14 = arith.constant 0 : index
    %c0_15 = arith.constant 0 : index
    %22 = vector.load %arg5[%c0_13, %c0_14, %c0_15] : memref<2x1x96xf32, #tpu.memory_space<vmem>>, vector<1x1x96xf32>
    %23 = vector.shape_cast %22 : vector<1x1x96xf32> to vector<1x96xf32>
    %24 = vector.broadcast %23 : vector<1x96xf32> to vector<8x96xf32>
    %25 = arith.addf %21, %24 : vector<8x96xf32>
    %26 = vector.extract_strided_slice %25 {offsets = [0, 0], sizes = [8, 32], strides = [1, 1]} : vector<8x96xf32> to vector<8x32xf32>
    %cst_16 = arith.constant 2.500000e-01 : f32
    %27 = vector.broadcast %cst_16 : f32 to vector<8x32xf32>
    %28 = arith.mulf %26, %27 : vector<8x32xf32>
    %29 = vector.extract_strided_slice %25 {offsets = [0, 32], sizes = [8, 32], strides = [1, 1]} : vector<8x96xf32> to vector<8x32xf32>
    %30 = vector.extract_strided_slice %25 {offsets = [0, 64], sizes = [8, 32], strides = [1, 1]} : vector<8x96xf32> to vector<8x32xf32>
    %31 = vector.extract_strided_slice %28 {offsets = [0, 0], sizes = [8, 16], strides = [1, 1]} : vector<8x32xf32> to vector<8x16xf32>
    %32 = vector.extract_strided_slice %29 {offsets = [0, 0], sizes = [8, 16], strides = [1, 1]} : vector<8x32xf32> to vector<8x16xf32>
    %33 = vector.extract_strided_slice %30 {offsets = [0, 0], sizes = [8, 16], strides = [1, 1]} : vector<8x32xf32> to vector<8x16xf32>
    %34 = tpu.transpose %32, [1, 0] : vector<8x16xf32> -> vector<16x8xf32>
    %cst_17 = arith.constant dense<0.000000e+00> : vector<8x8xf32>
    %35 = tpu.matmul %31, %34, %cst_17 {dimension_numbers = #tpu.dot_dimension_numbers<[1], [0], [0], [1], [0, 0, 1, 1], [], []>} : vector<8x16xf32>, vector<16x8xf32>, vector<8x8xf32> -> vector<8x8xf32>
    %36 = arith.addf %35, %18 : vector<8x8xf32>
    %cst_18 = arith.constant dense<0xFF800000> : vector<8xf32>
    %37 = vector.multi_reduction <maximumf>, %36, %cst_18 [1] : vector<8x8xf32> to vector<8xf32>
    %38 = vector.shape_cast %37 : vector<8xf32> to vector<8x1xf32>
    %39 = vector.broadcast %38 : vector<8x1xf32> to vector<8x8xf32>
    %40 = arith.subf %36, %39 : vector<8x8xf32>
    %41 = math.exp %40 : vector<8x8xf32>
    %cst_19 = arith.constant dense<0.000000e+00> : vector<8xf32>
    %42 = vector.multi_reduction <add>, %41, %cst_19 [1] : vector<8x8xf32> to vector<8xf32>
    %43 = vector.shape_cast %42 : vector<8xf32> to vector<8x1xf32>
    %44 = tpu.reciprocal %43 {approx = true} : vector<8x1xf32> -> vector<8x1xf32>
    %45 = vector.broadcast %44 : vector<8x1xf32> to vector<8x8xf32>
    %46 = arith.mulf %41, %45 : vector<8x8xf32>
    %cst_20 = arith.constant dense<0.000000e+00> : vector<8x16xf32>
    %47 = tpu.matmul %46, %33, %cst_20 {dimension_numbers = #tpu.dot_dimension_numbers<[1], [0], [0], [1], [0, 0, 1, 1], [], []>} : vector<8x8xf32>, vector<8x16xf32>, vector<8x16xf32> -> vector<8x16xf32>
    %48 = vector.extract_strided_slice %28 {offsets = [0, 16], sizes = [8, 16], strides = [1, 1]} : vector<8x32xf32> to vector<8x16xf32>
    %49 = vector.extract_strided_slice %29 {offsets = [0, 16], sizes = [8, 16], strides = [1, 1]} : vector<8x32xf32> to vector<8x16xf32>
    %50 = vector.extract_strided_slice %30 {offsets = [0, 16], sizes = [8, 16], strides = [1, 1]} : vector<8x32xf32> to vector<8x16xf32>
    %51 = tpu.transpose %49, [1, 0] : vector<8x16xf32> -> vector<16x8xf32>
    %cst_21 = arith.constant dense<0.000000e+00> : vector<8x8xf32>
    %52 = tpu.matmul %48, %51, %cst_21 {dimension_numbers = #tpu.dot_dimension_numbers<[1], [0], [0], [1], [0, 0, 1, 1], [], []>} : vector<8x16xf32>, vector<16x8xf32>, vector<8x8xf32> -> vector<8x8xf32>
    %53 = arith.addf %52, %18 : vector<8x8xf32>
    %cst_22 = arith.constant dense<0xFF800000> : vector<8xf32>
    %54 = vector.multi_reduction <maximumf>, %53, %cst_22 [1] : vector<8x8xf32> to vector<8xf32>
    %55 = vector.shape_cast %54 : vector<8xf32> to vector<8x1xf32>
    %56 = vector.broadcast %55 : vector<8x1xf32> to vector<8x8xf32>
    %57 = arith.subf %53, %56 : vector<8x8xf32>
    %58 = math.exp %57 : vector<8x8xf32>
    %cst_23 = arith.constant dense<0.000000e+00> : vector<8xf32>
    %59 = vector.multi_reduction <add>, %58, %cst_23 [1] : vector<8x8xf32> to vector<8xf32>
    %60 = vector.shape_cast %59 : vector<8xf32> to vector<8x1xf32>
    %61 = tpu.reciprocal %60 {approx = true} : vector<8x1xf32> -> vector<8x1xf32>
    %62 = vector.broadcast %61 : vector<8x1xf32> to vector<8x8xf32>
    %63 = arith.mulf %58, %62 : vector<8x8xf32>
    %cst_24 = arith.constant dense<0.000000e+00> : vector<8x16xf32>
    %64 = tpu.matmul %63, %50, %cst_24 {dimension_numbers = #tpu.dot_dimension_numbers<[1], [0], [0], [1], [0, 0, 1, 1], [], []>} : vector<8x8xf32>, vector<8x16xf32>, vector<8x16xf32> -> vector<8x16xf32>
    %65 = tpu.concatenate %47, %64 in 1 : vector<8x16xf32>, vector<8x16xf32> -> vector<8x32xf32>
    %c0_25 = arith.constant 0 : index
    %c0_26 = arith.constant 0 : index
    %c0_27 = arith.constant 0 : index
    %66 = vector.load %arg6[%c0_25, %c0_26, %c0_27] : memref<2x32x32xf32, #tpu.memory_space<vmem>>, vector<1x32x32xf32>
    %67 = vector.shape_cast %66 : vector<1x32x32xf32> to vector<32x32xf32>
    %cst_28 = arith.constant dense<0.000000e+00> : vector<8x32xf32>
    %68 = tpu.matmul %65, %67, %cst_28 {dimension_numbers = #tpu.dot_dimension_numbers<[1], [0], [0], [1], [0, 0, 1, 1], [], []>} : vector<8x32xf32>, vector<32x32xf32>, vector<8x32xf32> -> vector<8x32xf32>
    %c0_29 = arith.constant 0 : index
    %c0_30 = arith.constant 0 : index
    %c0_31 = arith.constant 0 : index
    %69 = vector.load %arg7[%c0_29, %c0_30, %c0_31] : memref<2x1x32xf32, #tpu.memory_space<vmem>>, vector<1x1x32xf32>
    %70 = vector.shape_cast %69 : vector<1x1x32xf32> to vector<1x32xf32>
    %71 = vector.broadcast %70 : vector<1x32xf32> to vector<8x32xf32>
    %72 = arith.addf %68, %71 : vector<8x32xf32>
    %73 = arith.addf %12, %72 : vector<8x32xf32>
    %c0_32 = arith.constant 0 : index
    %c0_33 = arith.constant 0 : index
    %c0_34 = arith.constant 0 : index
    %74 = vector.load %arg12[%c0_32, %c0_33, %c0_34] : memref<2x1x32xf32, #tpu.memory_space<vmem>>, vector<1x1x32xf32>
    %75 = vector.shape_cast %74 : vector<1x1x32xf32> to vector<1x32xf32>
    %c0_35 = arith.constant 0 : index
    %c0_36 = arith.constant 0 : index
    %c0_37 = arith.constant 0 : index
    %76 = vector.load %arg13[%c0_35, %c0_36, %c0_37] : memref<2x1x32xf32, #tpu.memory_space<vmem>>, vector<1x1x32xf32>
    %77 = vector.shape_cast %76 : vector<1x1x32xf32> to vector<1x32xf32>
    %cst_38 = arith.constant dense<0.000000e+00> : vector<8xf32>
    %78 = vector.multi_reduction <add>, %73, %cst_38 [1] : vector<8x32xf32> to vector<8xf32>
    %79 = vector.shape_cast %78 : vector<8xf32> to vector<8x1xf32>
    %cst_39 = arith.constant 3.200000e+01 : f32
    %80 = vector.broadcast %cst_39 : f32 to vector<8x1xf32>
    %81 = arith.divf %79, %80 : vector<8x1xf32>
    %82 = vector.broadcast %81 : vector<8x1xf32> to vector<8x32xf32>
    %83 = arith.subf %73, %82 : vector<8x32xf32>
    %84 = arith.mulf %83, %83 : vector<8x32xf32>
    %cst_40 = arith.constant dense<0.000000e+00> : vector<8xf32>
    %85 = vector.multi_reduction <add>, %84, %cst_40 [1] : vector<8x32xf32> to vector<8xf32>
    %86 = vector.shape_cast %85 : vector<8xf32> to vector<8x1xf32>
    %cst_41 = arith.constant 3.200000e+01 : f32
    %87 = vector.broadcast %cst_41 : f32 to vector<8x1xf32>
    %88 = arith.divf %86, %87 : vector<8x1xf32>
    %89 = vector.broadcast %81 : vector<8x1xf32> to vector<8x32xf32>
    %90 = arith.subf %73, %89 : vector<8x32xf32>
    %cst_42 = arith.constant 9.99999974E-6 : f32
    %91 = vector.broadcast %cst_42 : f32 to vector<8x1xf32>
    %92 = arith.addf %88, %91 : vector<8x1xf32>
    %93 = math.rsqrt %92 : vector<8x1xf32>
    %94 = vector.broadcast %93 : vector<8x1xf32> to vector<8x32xf32>
    %95 = arith.mulf %90, %94 : vector<8x32xf32>
    %96 = vector.broadcast %75 : vector<1x32xf32> to vector<8x32xf32>
    %97 = arith.mulf %95, %96 : vector<8x32xf32>
    %98 = vector.broadcast %77 : vector<1x32xf32> to vector<8x32xf32>
    %99 = arith.addf %97, %98 : vector<8x32xf32>
    %c0_43 = arith.constant 0 : index
    %c0_44 = arith.constant 0 : index
    %c0_45 = arith.constant 0 : index
    %100 = vector.load %arg8[%c0_43, %c0_44, %c0_45] : memref<2x32x64xf32, #tpu.memory_space<vmem>>, vector<1x32x64xf32>
    %101 = vector.shape_cast %100 : vector<1x32x64xf32> to vector<32x64xf32>
    %cst_46 = arith.constant dense<0.000000e+00> : vector<8x64xf32>
    %102 = tpu.matmul %99, %101, %cst_46 {dimension_numbers = #tpu.dot_dimension_numbers<[1], [0], [0], [1], [0, 0, 1, 1], [], []>} : vector<8x32xf32>, vector<32x64xf32>, vector<8x64xf32> -> vector<8x64xf32>
    %c0_47 = arith.constant 0 : index
    %c0_48 = arith.constant 0 : index
    %c0_49 = arith.constant 0 : index
    %103 = vector.load %arg9[%c0_47, %c0_48, %c0_49] : memref<2x1x64xf32, #tpu.memory_space<vmem>>, vector<1x1x64xf32>
    %104 = vector.shape_cast %103 : vector<1x1x64xf32> to vector<1x64xf32>
    %105 = vector.broadcast %104 : vector<1x64xf32> to vector<8x64xf32>
    %106 = arith.addf %102, %105 : vector<8x64xf32>
    %cst_50 = arith.constant 0.000000e+00 : f32
    %107 = vector.broadcast %cst_50 : f32 to vector<8x64xf32>
    %108 = arith.maximumf %106, %107 : vector<8x64xf32>
    %c0_51 = arith.constant 0 : index
    %c0_52 = arith.constant 0 : index
    %c0_53 = arith.constant 0 : index
    %109 = vector.load %arg10[%c0_51, %c0_52, %c0_53] : memref<2x64x32xf32, #tpu.memory_space<vmem>>, vector<1x64x32xf32>
    %110 = vector.shape_cast %109 : vector<1x64x32xf32> to vector<64x32xf32>
    %cst_54 = arith.constant dense<0.000000e+00> : vector<8x32xf32>
    %111 = tpu.matmul %108, %110, %cst_54 {dimension_numbers = #tpu.dot_dimension_numbers<[1], [0], [0], [1], [0, 0, 1, 1], [], []>} : vector<8x64xf32>, vector<64x32xf32>, vector<8x32xf32> -> vector<8x32xf32>
    %c0_55 = arith.constant 0 : index
    %c0_56 = arith.constant 0 : index
    %c0_57 = arith.constant 0 : index
    %112 = vector.load %arg11[%c0_55, %c0_56, %c0_57] : memref<2x1x32xf32, #tpu.memory_space<vmem>>, vector<1x1x32xf32>
    %113 = vector.shape_cast %112 : vector<1x1x32xf32> to vector<1x32xf32>
    %114 = vector.broadcast %113 : vector<1x32xf32> to vector<8x32xf32>
    %115 = arith.addf %111, %114 : vector<8x32xf32>
    %116 = arith.addf %99, %115 : vector<8x32xf32>
    %c0_58 = arith.constant 0 : index
    %c0_59 = arith.constant 0 : index
    %c0_60 = arith.constant 0 : index
    %117 = vector.load %arg14[%c0_58, %c0_59, %c0_60] : memref<2x1x32xf32, #tpu.memory_space<vmem>>, vector<1x1x32xf32>
    %118 = vector.shape_cast %117 : vector<1x1x32xf32> to vector<1x32xf32>
    %c0_61 = arith.constant 0 : index
    %c0_62 = arith.constant 0 : index
    %c0_63 = arith.constant 0 : index
    %119 = vector.load %arg15[%c0_61, %c0_62, %c0_63] : memref<2x1x32xf32, #tpu.memory_space<vmem>>, vector<1x1x32xf32>
    %120 = vector.shape_cast %119 : vector<1x1x32xf32> to vector<1x32xf32>
    %cst_64 = arith.constant dense<0.000000e+00> : vector<8xf32>
    %121 = vector.multi_reduction <add>, %116, %cst_64 [1] : vector<8x32xf32> to vector<8xf32>
    %122 = vector.shape_cast %121 : vector<8xf32> to vector<8x1xf32>
    %cst_65 = arith.constant 3.200000e+01 : f32
    %123 = vector.broadcast %cst_65 : f32 to vector<8x1xf32>
    %124 = arith.divf %122, %123 : vector<8x1xf32>
    %125 = vector.broadcast %124 : vector<8x1xf32> to vector<8x32xf32>
    %126 = arith.subf %116, %125 : vector<8x32xf32>
    %127 = arith.mulf %126, %126 : vector<8x32xf32>
    %cst_66 = arith.constant dense<0.000000e+00> : vector<8xf32>
    %128 = vector.multi_reduction <add>, %127, %cst_66 [1] : vector<8x32xf32> to vector<8xf32>
    %129 = vector.shape_cast %128 : vector<8xf32> to vector<8x1xf32>
    %cst_67 = arith.constant 3.200000e+01 : f32
    %130 = vector.broadcast %cst_67 : f32 to vector<8x1xf32>
    %131 = arith.divf %129, %130 : vector<8x1xf32>
    %132 = vector.broadcast %124 : vector<8x1xf32> to vector<8x32xf32>
    %133 = arith.subf %116, %132 : vector<8x32xf32>
    %cst_68 = arith.constant 9.99999974E-6 : f32
    %134 = vector.broadcast %cst_68 : f32 to vector<8x1xf32>
    %135 = arith.addf %131, %134 : vector<8x1xf32>
    %136 = math.rsqrt %135 : vector<8x1xf32>
    %137 = vector.broadcast %136 : vector<8x1xf32> to vector<8x32xf32>
    %138 = arith.mulf %133, %137 : vector<8x32xf32>
    %139 = vector.broadcast %118 : vector<1x32xf32> to vector<8x32xf32>
    %140 = arith.mulf %138, %139 : vector<8x32xf32>
    %141 = vector.broadcast %120 : vector<1x32xf32> to vector<8x32xf32>
    %142 = arith.addf %140, %141 : vector<8x32xf32>
    %c1 = arith.constant 1 : index
    %c0_69 = arith.constant 0 : index
    %c0_70 = arith.constant 0 : index
    %143 = vector.load %arg4[%c1, %c0_69, %c0_70] : memref<2x32x96xf32, #tpu.memory_space<vmem>>, vector<1x32x96xf32>
    %144 = vector.shape_cast %143 : vector<1x32x96xf32> to vector<32x96xf32>
    %cst_71 = arith.constant dense<0.000000e+00> : vector<8x96xf32>
    %145 = tpu.matmul %142, %144, %cst_71 {dimension_numbers = #tpu.dot_dimension_numbers<[1], [0], [0], [1], [0, 0, 1, 1], [], []>} : vector<8x32xf32>, vector<32x96xf32>, vector<8x96xf32> -> vector<8x96xf32>
    %c1_72 = arith.constant 1 : index
    %c0_73 = arith.constant 0 : index
    %c0_74 = arith.constant 0 : index
    %146 = vector.load %arg5[%c1_72, %c0_73, %c0_74] : memref<2x1x96xf32, #tpu.memory_space<vmem>>, vector<1x1x96xf32>
    %147 = vector.shape_cast %146 : vector<1x1x96xf32> to vector<1x96xf32>
    %148 = vector.broadcast %147 : vector<1x96xf32> to vector<8x96xf32>
    %149 = arith.addf %145, %148 : vector<8x96xf32>
    %150 = vector.extract_strided_slice %149 {offsets = [0, 0], sizes = [8, 32], strides = [1, 1]} : vector<8x96xf32> to vector<8x32xf32>
    %cst_75 = arith.constant 2.500000e-01 : f32
    %151 = vector.broadcast %cst_75 : f32 to vector<8x32xf32>
    %152 = arith.mulf %150, %151 : vector<8x32xf32>
    %153 = vector.extract_strided_slice %149 {offsets = [0, 32], sizes = [8, 32], strides = [1, 1]} : vector<8x96xf32> to vector<8x32xf32>
    %154 = vector.extract_strided_slice %149 {offsets = [0, 64], sizes = [8, 32], strides = [1, 1]} : vector<8x96xf32> to vector<8x32xf32>
    %155 = vector.extract_strided_slice %152 {offsets = [0, 0], sizes = [8, 16], strides = [1, 1]} : vector<8x32xf32> to vector<8x16xf32>
    %156 = vector.extract_strided_slice %153 {offsets = [0, 0], sizes = [8, 16], strides = [1, 1]} : vector<8x32xf32> to vector<8x16xf32>
    %157 = vector.extract_strided_slice %154 {offsets = [0, 0], sizes = [8, 16], strides = [1, 1]} : vector<8x32xf32> to vector<8x16xf32>
    %158 = tpu.transpose %156, [1, 0] : vector<8x16xf32> -> vector<16x8xf32>
    %cst_76 = arith.constant dense<0.000000e+00> : vector<8x8xf32>
    %159 = tpu.matmul %155, %158, %cst_76 {dimension_numbers = #tpu.dot_dimension_numbers<[1], [0], [0], [1], [0, 0, 1, 1], [], []>} : vector<8x16xf32>, vector<16x8xf32>, vector<8x8xf32> -> vector<8x8xf32>
    %160 = arith.addf %159, %18 : vector<8x8xf32>
    %cst_77 = arith.constant dense<0xFF800000> : vector<8xf32>
    %161 = vector.multi_reduction <maximumf>, %160, %cst_77 [1] : vector<8x8xf32> to vector<8xf32>
    %162 = vector.shape_cast %161 : vector<8xf32> to vector<8x1xf32>
    %163 = vector.broadcast %162 : vector<8x1xf32> to vector<8x8xf32>
    %164 = arith.subf %160, %163 : vector<8x8xf32>
    %165 = math.exp %164 : vector<8x8xf32>
    %cst_78 = arith.constant dense<0.000000e+00> : vector<8xf32>
    %166 = vector.multi_reduction <add>, %165, %cst_78 [1] : vector<8x8xf32> to vector<8xf32>
    %167 = vector.shape_cast %166 : vector<8xf32> to vector<8x1xf32>
    %168 = tpu.reciprocal %167 {approx = true} : vector<8x1xf32> -> vector<8x1xf32>
    %169 = vector.broadcast %168 : vector<8x1xf32> to vector<8x8xf32>
    %170 = arith.mulf %165, %169 : vector<8x8xf32>
    %cst_79 = arith.constant dense<0.000000e+00> : vector<8x16xf32>
    %171 = tpu.matmul %170, %157, %cst_79 {dimension_numbers = #tpu.dot_dimension_numbers<[1], [0], [0], [1], [0, 0, 1, 1], [], []>} : vector<8x8xf32>, vector<8x16xf32>, vector<8x16xf32> -> vector<8x16xf32>
    %172 = vector.extract_strided_slice %152 {offsets = [0, 16], sizes = [8, 16], strides = [1, 1]} : vector<8x32xf32> to vector<8x16xf32>
    %173 = vector.extract_strided_slice %153 {offsets = [0, 16], sizes = [8, 16], strides = [1, 1]} : vector<8x32xf32> to vector<8x16xf32>
    %174 = vector.extract_strided_slice %154 {offsets = [0, 16], sizes = [8, 16], strides = [1, 1]} : vector<8x32xf32> to vector<8x16xf32>
    %175 = tpu.transpose %173, [1, 0] : vector<8x16xf32> -> vector<16x8xf32>
    %cst_80 = arith.constant dense<0.000000e+00> : vector<8x8xf32>
    %176 = tpu.matmul %172, %175, %cst_80 {dimension_numbers = #tpu.dot_dimension_numbers<[1], [0], [0], [1], [0, 0, 1, 1], [], []>} : vector<8x16xf32>, vector<16x8xf32>, vector<8x8xf32> -> vector<8x8xf32>
    %177 = arith.addf %176, %18 : vector<8x8xf32>
    %cst_81 = arith.constant dense<0xFF800000> : vector<8xf32>
    %178 = vector.multi_reduction <maximumf>, %177, %cst_81 [1] : vector<8x8xf32> to vector<8xf32>
    %179 = vector.shape_cast %178 : vector<8xf32> to vector<8x1xf32>
    %180 = vector.broadcast %179 : vector<8x1xf32> to vector<8x8xf32>
    %181 = arith.subf %177, %180 : vector<8x8xf32>
    %182 = math.exp %181 : vector<8x8xf32>
    %cst_82 = arith.constant dense<0.000000e+00> : vector<8xf32>
    %183 = vector.multi_reduction <add>, %182, %cst_82 [1] : vector<8x8xf32> to vector<8xf32>
    %184 = vector.shape_cast %183 : vector<8xf32> to vector<8x1xf32>
    %185 = tpu.reciprocal %184 {approx = true} : vector<8x1xf32> -> vector<8x1xf32>
    %186 = vector.broadcast %185 : vector<8x1xf32> to vector<8x8xf32>
    %187 = arith.mulf %182, %186 : vector<8x8xf32>
    %cst_83 = arith.constant dense<0.000000e+00> : vector<8x16xf32>
    %188 = tpu.matmul %187, %174, %cst_83 {dimension_numbers = #tpu.dot_dimension_numbers<[1], [0], [0], [1], [0, 0, 1, 1], [], []>} : vector<8x8xf32>, vector<8x16xf32>, vector<8x16xf32> -> vector<8x16xf32>
    %189 = tpu.concatenate %171, %188 in 1 : vector<8x16xf32>, vector<8x16xf32> -> vector<8x32xf32>
    %c1_84 = arith.constant 1 : index
    %c0_85 = arith.constant 0 : index
    %c0_86 = arith.constant 0 : index
    %190 = vector.load %arg6[%c1_84, %c0_85, %c0_86] : memref<2x32x32xf32, #tpu.memory_space<vmem>>, vector<1x32x32xf32>
    %191 = vector.shape_cast %190 : vector<1x32x32xf32> to vector<32x32xf32>
    %cst_87 = arith.constant dense<0.000000e+00> : vector<8x32xf32>
    %192 = tpu.matmul %189, %191, %cst_87 {dimension_numbers = #tpu.dot_dimension_numbers<[1], [0], [0], [1], [0, 0, 1, 1], [], []>} : vector<8x32xf32>, vector<32x32xf32>, vector<8x32xf32> -> vector<8x32xf32>
    %c1_88 = arith.constant 1 : index
    %c0_89 = arith.constant 0 : index
    %c0_90 = arith.constant 0 : index
    %193 = vector.load %arg7[%c1_88, %c0_89, %c0_90] : memref<2x1x32xf32, #tpu.memory_space<vmem>>, vector<1x1x32xf32>
    %194 = vector.shape_cast %193 : vector<1x1x32xf32> to vector<1x32xf32>
    %195 = vector.broadcast %194 : vector<1x32xf32> to vector<8x32xf32>
    %196 = arith.addf %192, %195 : vector<8x32xf32>
    %197 = arith.addf %142, %196 : vector<8x32xf32>
    %c1_91 = arith.constant 1 : index
    %c0_92 = arith.constant 0 : index
    %c0_93 = arith.constant 0 : index
    %198 = vector.load %arg12[%c1_91, %c0_92, %c0_93] : memref<2x1x32xf32, #tpu.memory_space<vmem>>, vector<1x1x32xf32>
    %199 = vector.shape_cast %198 : vector<1x1x32xf32> to vector<1x32xf32>
    %c1_94 = arith.constant 1 : index
    %c0_95 = arith.constant 0 : index
    %c0_96 = arith.constant 0 : index
    %200 = vector.load %arg13[%c1_94, %c0_95, %c0_96] : memref<2x1x32xf32, #tpu.memory_space<vmem>>, vector<1x1x32xf32>
    %201 = vector.shape_cast %200 : vector<1x1x32xf32> to vector<1x32xf32>
    %cst_97 = arith.constant dense<0.000000e+00> : vector<8xf32>
    %202 = vector.multi_reduction <add>, %197, %cst_97 [1] : vector<8x32xf32> to vector<8xf32>
    %203 = vector.shape_cast %202 : vector<8xf32> to vector<8x1xf32>
    %cst_98 = arith.constant 3.200000e+01 : f32
    %204 = vector.broadcast %cst_98 : f32 to vector<8x1xf32>
    %205 = arith.divf %203, %204 : vector<8x1xf32>
    %206 = vector.broadcast %205 : vector<8x1xf32> to vector<8x32xf32>
    %207 = arith.subf %197, %206 : vector<8x32xf32>
    %208 = arith.mulf %207, %207 : vector<8x32xf32>
    %cst_99 = arith.constant dense<0.000000e+00> : vector<8xf32>
    %209 = vector.multi_reduction <add>, %208, %cst_99 [1] : vector<8x32xf32> to vector<8xf32>
    %210 = vector.shape_cast %209 : vector<8xf32> to vector<8x1xf32>
    %cst_100 = arith.constant 3.200000e+01 : f32
    %211 = vector.broadcast %cst_100 : f32 to vector<8x1xf32>
    %212 = arith.divf %210, %211 : vector<8x1xf32>
    %213 = vector.broadcast %205 : vector<8x1xf32> to vector<8x32xf32>
    %214 = arith.subf %197, %213 : vector<8x32xf32>
    %cst_101 = arith.constant 9.99999974E-6 : f32
    %215 = vector.broadcast %cst_101 : f32 to vector<8x1xf32>
    %216 = arith.addf %212, %215 : vector<8x1xf32>
    %217 = math.rsqrt %216 : vector<8x1xf32>
    %218 = vector.broadcast %217 : vector<8x1xf32> to vector<8x32xf32>
    %219 = arith.mulf %214, %218 : vector<8x32xf32>
    %220 = vector.broadcast %199 : vector<1x32xf32> to vector<8x32xf32>
    %221 = arith.mulf %219, %220 : vector<8x32xf32>
    %222 = vector.broadcast %201 : vector<1x32xf32> to vector<8x32xf32>
    %223 = arith.addf %221, %222 : vector<8x32xf32>
    %c1_102 = arith.constant 1 : index
    %c0_103 = arith.constant 0 : index
    %c0_104 = arith.constant 0 : index
    %224 = vector.load %arg8[%c1_102, %c0_103, %c0_104] : memref<2x32x64xf32, #tpu.memory_space<vmem>>, vector<1x32x64xf32>
    %225 = vector.shape_cast %224 : vector<1x32x64xf32> to vector<32x64xf32>
    %cst_105 = arith.constant dense<0.000000e+00> : vector<8x64xf32>
    %226 = tpu.matmul %223, %225, %cst_105 {dimension_numbers = #tpu.dot_dimension_numbers<[1], [0], [0], [1], [0, 0, 1, 1], [], []>} : vector<8x32xf32>, vector<32x64xf32>, vector<8x64xf32> -> vector<8x64xf32>
    %c1_106 = arith.constant 1 : index
    %c0_107 = arith.constant 0 : index
    %c0_108 = arith.constant 0 : index
    %227 = vector.load %arg9[%c1_106, %c0_107, %c0_108] : memref<2x1x64xf32, #tpu.memory_space<vmem>>, vector<1x1x64xf32>
    %228 = vector.shape_cast %227 : vector<1x1x64xf32> to vector<1x64xf32>
    %229 = vector.broadcast %228 : vector<1x64xf32> to vector<8x64xf32>
    %230 = arith.addf %226, %229 : vector<8x64xf32>
    %cst_109 = arith.constant 0.000000e+00 : f32
    %231 = vector.broadcast %cst_109 : f32 to vector<8x64xf32>
    %232 = arith.maximumf %230, %231 : vector<8x64xf32>
    %c1_110 = arith.constant 1 : index
    %c0_111 = arith.constant 0 : index
    %c0_112 = arith.constant 0 : index
    %233 = vector.load %arg10[%c1_110, %c0_111, %c0_112] : memref<2x64x32xf32, #tpu.memory_space<vmem>>, vector<1x64x32xf32>
    %234 = vector.shape_cast %233 : vector<1x64x32xf32> to vector<64x32xf32>
    %cst_113 = arith.constant dense<0.000000e+00> : vector<8x32xf32>
    %235 = tpu.matmul %232, %234, %cst_113 {dimension_numbers = #tpu.dot_dimension_numbers<[1], [0], [0], [1], [0, 0, 1, 1], [], []>} : vector<8x64xf32>, vector<64x32xf32>, vector<8x32xf32> -> vector<8x32xf32>
    %c1_114 = arith.constant 1 : index
    %c0_115 = arith.constant 0 : index
    %c0_116 = arith.constant 0 : index
    %236 = vector.load %arg11[%c1_114, %c0_115, %c0_116] : memref<2x1x32xf32, #tpu.memory_space<vmem>>, vector<1x1x32xf32>
    %237 = vector.shape_cast %236 : vector<1x1x32xf32> to vector<1x32xf32>
    %238 = vector.broadcast %237 : vector<1x32xf32> to vector<8x32xf32>
    %239 = arith.addf %235, %238 : vector<8x32xf32>
    %240 = arith.addf %223, %239 : vector<8x32xf32>
    %c1_117 = arith.constant 1 : index
    %c0_118 = arith.constant 0 : index
    %c0_119 = arith.constant 0 : index
    %241 = vector.load %arg14[%c1_117, %c0_118, %c0_119] : memref<2x1x32xf32, #tpu.memory_space<vmem>>, vector<1x1x32xf32>
    %242 = vector.shape_cast %241 : vector<1x1x32xf32> to vector<1x32xf32>
    %c1_120 = arith.constant 1 : index
    %c0_121 = arith.constant 0 : index
    %c0_122 = arith.constant 0 : index
    %243 = vector.load %arg15[%c1_120, %c0_121, %c0_122] : memref<2x1x32xf32, #tpu.memory_space<vmem>>, vector<1x1x32xf32>
    %244 = vector.shape_cast %243 : vector<1x1x32xf32> to vector<1x32xf32>
    %cst_123 = arith.constant dense<0.000000e+00> : vector<8xf32>
    %245 = vector.multi_reduction <add>, %240, %cst_123 [1] : vector<8x32xf32> to vector<8xf32>
    %246 = vector.shape_cast %245 : vector<8xf32> to vector<8x1xf32>
    %cst_124 = arith.constant 3.200000e+01 : f32
    %247 = vector.broadcast %cst_124 : f32 to vector<8x1xf32>
    %248 = arith.divf %246, %247 : vector<8x1xf32>
    %249 = vector.broadcast %248 : vector<8x1xf32> to vector<8x32xf32>
    %250 = arith.subf %240, %249 : vector<8x32xf32>
    %251 = arith.mulf %250, %250 : vector<8x32xf32>
    %cst_125 = arith.constant dense<0.000000e+00> : vector<8xf32>
    %252 = vector.multi_reduction <add>, %251, %cst_125 [1] : vector<8x32xf32> to vector<8xf32>
    %253 = vector.shape_cast %252 : vector<8xf32> to vector<8x1xf32>
    %cst_126 = arith.constant 3.200000e+01 : f32
    %254 = vector.broadcast %cst_126 : f32 to vector<8x1xf32>
    %255 = arith.divf %253, %254 : vector<8x1xf32>
    %256 = vector.broadcast %248 : vector<8x1xf32> to vector<8x32xf32>
    %257 = arith.subf %240, %256 : vector<8x32xf32>
    %cst_127 = arith.constant 9.99999974E-6 : f32
    %258 = vector.broadcast %cst_127 : f32 to vector<8x1xf32>
    %259 = arith.addf %255, %258 : vector<8x1xf32>
    %260 = math.rsqrt %259 : vector<8x1xf32>
    %261 = vector.broadcast %260 : vector<8x1xf32> to vector<8x32xf32>
    %262 = arith.mulf %257, %261 : vector<8x32xf32>
    %263 = vector.broadcast %242 : vector<1x32xf32> to vector<8x32xf32>
    %264 = arith.mulf %262, %263 : vector<8x32xf32>
    %265 = vector.broadcast %244 : vector<1x32xf32> to vector<8x32xf32>
    %266 = arith.addf %264, %265 : vector<8x32xf32>
    %c0_128 = arith.constant 0 : index
    %c0_129 = arith.constant 0 : index
    %267 = vector.load %arg16[%c0_128, %c0_129] : memref<32x32xf32, #tpu.memory_space<vmem>>, vector<32x32xf32>
    %cst_130 = arith.constant dense<0.000000e+00> : vector<8x32xf32>
    %268 = tpu.matmul %266, %267, %cst_130 {dimension_numbers = #tpu.dot_dimension_numbers<[1], [0], [0], [1], [0, 0, 1, 1], [], []>} : vector<8x32xf32>, vector<32x32xf32>, vector<8x32xf32> -> vector<8x32xf32>
    %c0_131 = arith.constant 0 : index
    %c0_132 = arith.constant 0 : index
    %269 = vector.load %arg17[%c0_131, %c0_132] : memref<1x32xf32, #tpu.memory_space<vmem>>, vector<1x32xf32>
    %270 = vector.broadcast %269 : vector<1x32xf32> to vector<8x32xf32>
    %271 = arith.addf %268, %270 : vector<8x32xf32>
    %c0_133 = arith.constant 0 : index
    %c0_134 = arith.constant 0 : index
    %c0_135 = arith.constant 0 : index
    %272 = vector.load %arg18[%c0_133, %c0_134, %c0_135] : memref<1x8x32xf32, #tpu.memory_space<vmem>>, vector<1x8x32xf32>
    %273 = vector.shape_cast %272 : vector<1x8x32xf32> to vector<8x32xf32>
    %274 = vector.shape_cast %271 : vector<8x32xf32> to vector<1x8x32xf32>
    tpu.vector_store %arg18[%c0_133, %c0_134, %c0_135], %274 {strides = array<i32>} : memref<1x8x32xf32, #tpu.memory_space<vmem>>, vector<1x8x32xf32>,
    return
  }
  func.func @transform_0(%arg0: i32) -> (i32, i32, i32) {
    %c0_i32 = arith.constant 0 : i32
    %c0_i32_0 = arith.constant 0 : i32
    %c0_i32_1 = arith.constant 0 : i32
    return %arg0, %c0_i32, %c0_i32_0 : i32, i32, i32
  }
  func.func @transform_1(%arg0: i32) -> (i32, i32) {
    %c0_i32 = arith.constant 0 : i32
    %c0_i32_0 = arith.constant 0 : i32
    %c0_i32_1 = arith.constant 0 : i32
    return %c0_i32, %c0_i32_0 : i32, i32
  }
  func.func @transform_2(%arg0: i32) -> (i32, i32) {
    %c0_i32 = arith.constant 0 : i32
    %c0_i32_0 = arith.constant 0 : i32
    %c0_i32_1 = arith.constant 0 : i32
    return %c0_i32, %c0_i32_0 : i32, i32
  }
  func.func @transform_3(%arg0: i32) -> (i32, i32, i32) {
    %c0_i32 = arith.constant 0 : i32
    %c0_i32_0 = arith.constant 0 : i32
    %c0_i32_1 = arith.constant 0 : i32
    %c0_i32_2 = arith.constant 0 : i32
    return %c0_i32, %c0_i32_0, %c0_i32_1 : i32, i32, i32
  }
  func.func @transform_4(%arg0: i32) -> (i32, i32, i32) {
    %c0_i32 = arith.constant 0 : i32
    %c0_i32_0 = arith.constant 0 : i32
    %c0_i32_1 = arith.constant 0 : i32
    %c0_i32_2 = arith.constant 0 : i32
    return %c0_i32, %c0_i32_0, %c0_i32_1 : i32, i32, i32
  }
  func.func @transform_5(%arg0: i32) -> (i32, i32, i32) {
    %c0_i32 = arith.constant 0 : i32
    %c0_i32_0 = arith.constant 0 : i32
    %c0_i32_1 = arith.constant 0 : i32
    %c0_i32_2 = arith.constant 0 : i32
    return %c0_i32, %c0_i32_0, %c0_i32_1 : i32, i32, i32
  }
  func.func @transform_6(%arg0: i32) -> (i32, i32, i32) {
    %c0_i32 = arith.constant 0 : i32
    %c0_i32_0 = arith.constant 0 : i32
    %c0_i32_1 = arith.constant 0 : i32
    %c0_i32_2 = arith.constant 0 : i32
    return %c0_i32, %c0_i32_0, %c0_i32_1 : i32, i32, i32
  }
  func.func @transform_7(%arg0: i32) -> (i32, i32, i32) {
    %c0_i32 = arith.constant 0 : i32
    %c0_i32_0 = arith.constant 0 : i32
    %c0_i32_1 = arith.constant 0 : i32
    %c0_i32_2 = arith.constant 0 : i32
    return %c0_i32, %c0_i32_0, %c0_i32_1 : i32, i32, i32
  }
  func.func @transform_8(%arg0: i32) -> (i32, i32, i32) {
    %c0_i32 = arith.constant 0 : i32
    %c0_i32_0 = arith.constant 0 : i32
    %c0_i32_1 = arith.constant 0 : i32
    %c0_i32_2 = arith.constant 0 : i32
    return %c0_i32, %c0_i32_0, %c0_i32_1 : i32, i32, i32
  }
  func.func @transform_9(%arg0: i32) -> (i32, i32, i32) {
    %c0_i32 = arith.constant 0 : i32
    %c0_i32_0 = arith.constant 0 : i32
    %c0_i32_1 = arith.constant 0 : i32
    %c0_i32_2 = arith.constant 0 : i32
    return %c0_i32, %c0_i32_0, %c0_i32_1 : i32, i32, i32
  }
  func.func @transform_10(%arg0: i32) -> (i32, i32, i32) {
    %c0_i32 = arith.constant 0 : i32
    %c0_i32_0 = arith.constant 0 : i32
    %c0_i32_1 = arith.constant 0 : i32
    %c0_i32_2 = arith.constant 0 : i32
    return %c0_i32, %c0_i32_0, %c0_i32_1 : i32, i32, i32
  }
  func.func @transform_11(%arg0: i32) -> (i32, i32, i32) {
    %c0_i32 = arith.constant 0 : i32
    %c0_i32_0 = arith.constant 0 : i32
    %c0_i32_1 = arith.constant 0 : i32
    %c0_i32_2 = arith.constant 0 : i32
    return %c0_i32, %c0_i32_0, %c0_i32_1 : i32, i32, i32
  }
  func.func @transform_12(%arg0: i32) -> (i32, i32, i32) {
    %c0_i32 = arith.constant 0 : i32
    %c0_i32_0 = arith.constant 0 : i32
    %c0_i32_1 = arith.constant 0 : i32
    %c0_i32_2 = arith.constant 0 : i32
    return %c0_i32, %c0_i32_0, %c0_i32_1 : i32, i32, i32
  }
  func.func @transform_13(%arg0: i32) -> (i32, i32, i32) {
    %c0_i32 = arith.constant 0 : i32
    %c0_i32_0 = arith.constant 0 : i32
    %c0_i32_1 = arith.constant 0 : i32
    %c0_i32_2 = arith.constant 0 : i32
    return %c0_i32, %c0_i32_0, %c0_i32_1 : i32, i32, i32
  }
  func.func @transform_14(%arg0: i32) -> (i32, i32, i32) {
    %c0_i32 = arith.constant 0 : i32
    %c0_i32_0 = arith.constant 0 : i32
    %c0_i32_1 = arith.constant 0 : i32
    %c0_i32_2 = arith.constant 0 : i32
    return %c0_i32, %c0_i32_0, %c0_i32_1 : i32, i32, i32
  }
  func.func @transform_15(%arg0: i32) -> (i32, i32) {
    %c0_i32 = arith.constant 0 : i32
    %c0_i32_0 = arith.constant 0 : i32
    %c0_i32_1 = arith.constant 0 : i32
    return %c0_i32, %c0_i32_0 : i32, i32
  }
  func.func @transform_16(%arg0: i32) -> (i32, i32) {
    %c0_i32 = arith.constant 0 : i32
    %c0_i32_0 = arith.constant 0 : i32
    %c0_i32_1 = arith.constant 0 : i32
    return %c0_i32, %c0_i32_0 : i32, i32
  }
  func.func @transform_17(%arg0: i32) -> (i32, i32, i32) {
    %c0_i32 = arith.constant 0 : i32
    %c0_i32_0 = arith.constant 0 : i32
    %c0_i32_1 = arith.constant 0 : i32
    return %arg0, %c0_i32, %c0_i32_0 : i32, i32, i32
  }
}

</mosaic_0001>

<llo_original>
// kernel: transformer_forward.1
$region0: #{transformer_forward.1}
  #allocation0 [shape = 'u32[]', space=smem, size = 0x4, offset = 0x4, fixed_abs, tag = 'smem constant byte address 0x4 - core index']
  #allocation1 [shape = 'u32[144,128]{1,0:T(1,128)}', space=vmem, size = 0x12000, scoped, tag = 'internal scratch']
  %s0 = inlined_call_operand.vmem [shape: s32[2,8,1], index: 0, kind: input, shape index: {}]
  %s1 = inlined_call_operand.vmem [shape: f32[32,32], index: 1, kind: input, shape index: {}]
  %s2 = inlined_call_operand.vmem [shape: f32[8,32], index: 2, kind: input, shape index: {}]
  %s3 = inlined_call_operand.vmem [shape: f32[2,32,96], index: 3, kind: input, shape index: {}]
  %s4 = inlined_call_operand.vmem [shape: f32[2,1,96], index: 4, kind: input, shape index: {}]
  %s5 = inlined_call_operand.vmem [shape: f32[2,32,32], index: 5, kind: input, shape index: {}]
  %s6 = inlined_call_operand.vmem [shape: f32[2,1,32], index: 6, kind: input, shape index: {}]
  %s7 = inlined_call_operand.vmem [shape: f32[2,32,64], index: 7, kind: input, shape index: {}]
  %s8 = inlined_call_operand.hbm [shape: f32[2,1,64], index: 8, kind: input, shape index: {}]
  %s9 = inlined_call_operand.vmem [shape: f32[2,64,32], index: 9, kind: input, shape index: {}]
  %s10 = inlined_call_operand.hbm [shape: f32[2,1,32], index: 10, kind: input, shape index: {}]
  %s11 = inlined_call_operand.vmem [shape: f32[2,1,32], index: 11, kind: input, shape index: {}]
  %s12 = inlined_call_operand.vmem [shape: f32[2,1,32], index: 12, kind: input, shape index: {}]
  %s13 = inlined_call_operand.vmem [shape: f32[2,1,32], index: 13, kind: input, shape index: {}]
  %s14 = inlined_call_operand.vmem [shape: f32[2,1,32], index: 14, kind: input, shape index: {}]
  %s15 = inlined_call_operand.vmem [shape: f32[32,32], index: 15, kind: input, shape index: {}]
  %s16 = inlined_call_operand.vmem [shape: f32[1,32], index: 16, kind: input, shape index: {}]
  %s17 = inlined_call_operand.vmem [shape: f32[2,8,32], index: 17, kind: output, shape index: {}]
  %s18 = sld [smem:[#allocation0]]
  $region109: #{transformer_forward.1} parent=0
    _
  %s20 = ssub.s32 1, %s18
  %s21 = scalar_select 0, %s20, %s18
  $region1: #{transformer_forward.1} parent=0
    #allocation2 [shape = 'u8[1024]{0}', space=vmem, size = 0x400, scoped, tag = 'input window, operand 8, single buffered']
    #allocation3 [shape = 's32[2]{0}', space=sflag, size = 0x8, scoped, tag = 'scoped memory for transformer_forward.1']
    #allocation4 [shape = 'u8[1024]{0}', space=vmem, size = 0x400, scoped, tag = 'input window, operand 10, single buffered']
    #allocation5 [shape = 's32[1]{0}', space=sflag, size = 0x4, scoped, tag = 'scoped memory for transformer_forward.1']
    %22 = vsyncpa [#allocation3], 0
    %23 = vsyncpa [#allocation5], 0
    loop: start=0, step=1, limit=4
    $region2: #{transformer_forward.1} parent=1 // loop_pre_header
      _
    $region3: #{transformer_forward.1} parent=1 // loop_header
      %s25 = sphi 0, %s29
      %p26 = scmp.ge.s32.totalorder %s25, 4
      %s35 = sphi 0, %s37
      %s38 = sphi 0, %s35
      %s39 = sphi 0, %s38
      %s55 = sphi 0, %s39
      %s59 = sphi 0, %s59
      %s61 = sphi 0, %s59
      %s62 = sphi 0, %s61
      %s76 = sphi 0, %s62
      %s80 = sphi 0, %s80
      %s82 = sphi 0, %s80
      %s83 = sphi 0, %s82
      %s97 = sphi 0, %s83
      %s101 = sphi 0, %s101
      %s103 = sphi 0, %s101
      %s104 = sphi 0, %s103
      %s118 = sphi 0, %s104
      %s122 = sphi 0, %s122
      %s124 = sphi 0, %s122
      %s125 = sphi 0, %s124
      %s139 = sphi 0, %s125
      %s143 = sphi 0, %s143
      %s145 = sphi 0, %s143
      %s146 = sphi 0, %s145
      %s160 = sphi 0, %s146
      %s164 = sphi 0, %s164
      %s166 = sphi 0, %s164
      %s167 = sphi 0, %s166
      %s181 = sphi 0, %s167
      %s185 = sphi 0, %s185
      %s187 = sphi 0, %s185
      %s188 = sphi 0, %s187
      %s202 = sphi 0, %s188
      %s206 = sphi 0, %s206
      %s208 = sphi 0, %s206
      %s209 = sphi 0, %s208
      %s223 = sphi 0, %s209
      %s227 = sphi 0, %s227
      %s229 = sphi 0, %s227
      %s230 = sphi 0, %s229
      %s244 = sphi 0, %s230
      %s248 = sphi 0, %s248
      %s250 = sphi 0, %s248
      %s251 = sphi 0, %s250
      %s265 = sphi 0, %s251
      %s269 = sphi 0, %s269
      %s271 = sphi 0, %s269
      %s272 = sphi 0, %s271
      %s286 = sphi 0, %s272
      %s290 = sphi 0, %s290
      %s292 = sphi 0, %s290
      %s293 = sphi 0, %s292
      %s307 = sphi 0, %s293
      %s311 = sphi 0, %s311
      %s313 = sphi 0, %s311
      %s314 = sphi 0, %s313
      %s328 = sphi 0, %s314
      %s332 = sphi 0, %s332
      %s334 = sphi 0, %s332
      %s335 = sphi 0, %s334
      %s349 = sphi 0, %s335
      %s353 = sphi 0, %s353
      %s355 = sphi 0, %s353
      %s356 = sphi 0, %s355
      %s370 = sphi 0, %s356
      %s374 = sphi 0, %s374
      %s376 = sphi 0, %s374
      %s377 = sphi 0, %s376
      %s391 = sphi 0, %s377
      %s397 = sphi 0, %s399
      %s400 = sphi 0, %s397
      %s401 = sphi 0, %s400
      %s417 = sphi 0, %s401
    $region4: #{transformer_forward.1} parent=1 // loop_header_branch
      %28 = sbr.rel (%p26) target = $region8
    $region5: #{transformer_forward.1} parent=1 // loop_body
      %s30 = ssub.s32 %s25, 1
      %s31 = ssub.s32 %s25, 2
      %s32 = sadd.s32 %s25, 1
      %s33 = ssub.s32 %s25, %s32
      %p34 = scmp.eq.s32.totalorder %s33, 0
      %s36 = sadd.s32 %s35, 1
      %s37 = scalar_select %p34, %s35, %s36
      %p40 = pneg %p34
      %p41 = scmp.eq.s32.totalorder %s25, 1
      %p42 = por %p40, %p41
      %p43 = scmp.ne.s32.totalorder %s35, %s38
      %p44 = scmp.eq.s32.totalorder %s25, 0
      %p45 = por %p43, %p44
      %p46 = scmp.ne.s32.totalorder %s35, %s38
      %p47 = scmp.eq.s32.totalorder %s30, 1
      %p48 = por %p46, %p47
      %p49 = scmp.ne.s32.totalorder %s38, %s39
      %p50 = scmp.eq.s32.totalorder %s30, 0
      %p51 = por %p49, %p50
      %p52 = scmp.ne.s32.totalorder %s38, %s39
      %p53 = scmp.eq.s32.totalorder %s31, 1
      %p54 = por %p52, %p53
      %p56 = scmp.ne.s32.totalorder %s39, %s55
      %p57 = scmp.eq.s32.totalorder %s31, 0
      %p58 = por %p56, %p57
      %s60 = sadd.s32 %s59, 1
      %p63 = scmp.eq.s32.totalorder %s25, 1
      %p64 = scmp.ne.s32.totalorder %s59, %s61
      %p65 = scmp.eq.s32.totalorder %s25, 0
      %p66 = por %p64, %p65
      %p67 = scmp.ne.s32.totalorder %s59, %s61
      %p68 = scmp.eq.s32.totalorder %s30, 1
      %p69 = por %p67, %p68
      %p70 = scmp.ne.s32.totalorder %s61, %s62
      %p71 = scmp.eq.s32.totalorder %s30, 0
      %p72 = por %p70, %p71
      %p73 = scmp.ne.s32.totalorder %s61, %s62
      %p74 = scmp.eq.s32.totalorder %s31, 1
      %p75 = por %p73, %p74
      %p77 = scmp.ne.s32.totalorder %s62, %s76
      %p78 = scmp.eq.s32.totalorder %s31, 0
      %p79 = por %p77, %p78
      %s81 = sadd.s32 %s80, 1
      %p84 = scmp.eq.s32.totalorder %s25, 1
      %p85 = scmp.ne.s32.totalorder %s80, %s82
      %p86 = scmp.eq.s32.totalorder %s25, 0
      %p87 = por %p85, %p86
      %p88 = scmp.ne.s32.totalorder %s80, %s82
      %p89 = scmp.eq.s32.totalorder %s30, 1
      %p90 = por %p88, %p89
      %p91 = scmp.ne.s32.totalorder %s82, %s83
      %p92 = scmp.eq.s32.totalorder %s30, 0
      %p93 = por %p91, %p92
      %p94 = scmp.ne.s32.totalorder %s82, %s83
      %p95 = scmp.eq.s32.totalorder %s31, 1
      %p96 = por %p94, %p95
      %p98 = scmp.ne.s32.totalorder %s83, %s97
      %p99 = scmp.eq.s32.totalorder %s31, 0
      %p100 = por %p98, %p99
      %s102 = sadd.s32 %s101, 1
      %p105 = scmp.eq.s32.totalorder %s25, 1
      %p106 = scmp.ne.s32.totalorder %s101, %s103
      %p107 = scmp.eq.s32.totalorder %s25, 0
      %p108 = por %p106, %p107
      %p109 = scmp.ne.s32.totalorder %s101, %s103
      %p110 = scmp.eq.s32.totalorder %s30, 1
      %p111 = por %p109, %p110
      %p112 = scmp.ne.s32.totalorder %s103, %s104
      %p113 = scmp.eq.s32.totalorder %s30, 0
      %p114 = por %p112, %p113
      %p115 = scmp.ne.s32.totalorder %s103, %s104
      %p116 = scmp.eq.s32.totalorder %s31, 1
      %p117 = por %p115, %p116
      %p119 = scmp.ne.s32.totalorder %s104, %s118
      %p120 = scmp.eq.s32.totalorder %s31, 0
      %p121 = por %p119, %p120
      %s123 = sadd.s32 %s122, 1
      %p126 = scmp.eq.s32.totalorder %s25, 1
      %p127 = scmp.ne.s32.totalorder %s122, %s124
      %p128 = scmp.eq.s32.totalorder %s25, 0
      %p129 = por %p127, %p128
      %p130 = scmp.ne.s32.totalorder %s122, %s124
      %p131 = scmp.eq.s32.totalorder %s30, 1
      %p132 = por %p130, %p131
      %p133 = scmp.ne.s32.totalorder %s124, %s125
      %p134 = scmp.eq.s32.totalorder %s30, 0
      %p135 = por %p133, %p134
      %p136 = scmp.ne.s32.totalorder %s124, %s125
      %p137 = scmp.eq.s32.totalorder %s31, 1
      %p138 = por %p136, %p137
      %p140 = scmp.ne.s32.totalorder %s125, %s139
      %p141 = scmp.eq.s32.totalorder %s31, 0
      %p142 = por %p140, %p141
      %s144 = sadd.s32 %s143, 1
      %p147 = scmp.eq.s32.totalorder %s25, 1
      %p148 = scmp.ne.s32.totalorder %s143, %s145
      %p149 = scmp.eq.s32.totalorder %s25, 0
      %p150 = por %p148, %p149
      %p151 = scmp.ne.s32.totalorder %s143, %s145
      %p152 = scmp.eq.s32.totalorder %s30, 1
      %p153 = por %p151, %p152
      %p154 = scmp.ne.s32.totalorder %s145, %s146
      %p155 = scmp.eq.s32.totalorder %s30, 0
      %p156 = por %p154, %p155
      %p157 = scmp.ne.s32.totalorder %s145, %s146
      %p158 = scmp.eq.s32.totalorder %s31, 1
      %p159 = por %p157, %p158
      %p161 = scmp.ne.s32.totalorder %s146, %s160
      %p162 = scmp.eq.s32.totalorder %s31, 0
      %p163 = por %p161, %p162
      %s165 = sadd.s32 %s164, 1
      %p168 = scmp.eq.s32.totalorder %s25, 1
      %p169 = scmp.ne.s32.totalorder %s164, %s166
      %p170 = scmp.eq.s32.totalorder %s25, 0
      %p171 = por %p169, %p170
      %p172 = scmp.ne.s32.totalorder %s164, %s166
      %p173 = scmp.eq.s32.totalorder %s30, 1
      %p174 = por %p172, %p173
      %p175 = scmp.ne.s32.totalorder %s166, %s167
      %p176 = scmp.eq.s32.totalorder %s30, 0
      %p177 = por %p175, %p176
      %p178 = scmp.ne.s32.totalorder %s166, %s167
      %p179 = scmp.eq.s32.totalorder %s31, 1
      %p180 = por %p178, %p179
      %p182 = scmp.ne.s32.totalorder %s167, %s181
      %p183 = scmp.eq.s32.totalorder %s31, 0
      %p184 = por %p182, %p183
      %s186 = sadd.s32 %s185, 1
      %p189 = scmp.eq.s32.totalorder %s25, 1
      %p190 = scmp.ne.s32.totalorder %s185, %s187
      %p191 = scmp.eq.s32.totalorder %s25, 0
      %p192 = por %p190, %p191
      %p193 = scmp.ne.s32.totalorder %s185, %s187
      %p194 = scmp.eq.s32.totalorder %s30, 1
      %p195 = por %p193, %p194
      %p196 = scmp.ne.s32.totalorder %s187, %s188
      %p197 = scmp.eq.s32.totalorder %s30, 0
      %p198 = por %p196, %p197
      %p199 = scmp.ne.s32.totalorder %s187, %s188
      %p200 = scmp.eq.s32.totalorder %s31, 1
      %p201 = por %p199, %p200
      %p203 = scmp.ne.s32.totalorder %s188, %s202
      %p204 = scmp.eq.s32.totalorder %s31, 0
      %p205 = por %p203, %p204
      %s207 = sadd.s32 %s206, 1
      %p210 = scmp.eq.s32.totalorder %s25, 1
      %p211 = scmp.ne.s32.totalorder %s206, %s208
      %p212 = scmp.eq.s32.totalorder %s25, 0
      %p213 = por %p211, %p212
      %p214 = scmp.ne.s32.totalorder %s206, %s208
      %p215 = scmp.eq.s32.totalorder %s30, 1
      %p216 = por %p214, %p215
      %p217 = scmp.ne.s32.totalorder %s208, %s209
      %p218 = scmp.eq.s32.totalorder %s30, 0
      %p219 = por %p217, %p218
      %p220 = scmp.ne.s32.totalorder %s208, %s209
      %p221 = scmp.eq.s32.totalorder %s31, 1
      %p222 = por %p220, %p221
      %p224 = scmp.ne.s32.totalorder %s209, %s223
      %p225 = scmp.eq.s32.totalorder %s31, 0
      %p226 = por %p224, %p225
      %s228 = sadd.s32 %s227, 1
      %p231 = scmp.eq.s32.totalorder %s25, 1
      %p232 = scmp.ne.s32.totalorder %s227, %s229
      %p233 = scmp.eq.s32.totalorder %s25, 0
      %p234 = por %p232, %p233
      %p235 = scmp.ne.s32.totalorder %s227, %s229
      %p236 = scmp.eq.s32.totalorder %s30, 1
      %p237 = por %p235, %p236
      %p238 = scmp.ne.s32.totalorder %s229, %s230
      %p239 = scmp.eq.s32.totalorder %s30, 0
      %p240 = por %p238, %p239
      %p241 = scmp.ne.s32.totalorder %s229, %s230
      %p242 = scmp.eq.s32.totalorder %s31, 1
      %p243 = por %p241, %p242
      %p245 = scmp.ne.s32.totalorder %s230, %s244
      %p246 = scmp.eq.s32.totalorder %s31, 0
      %p247 = por %p245, %p246
      %s249 = sadd.s32 %s248, 1
      %p252 = scmp.eq.s32.totalorder %s25, 1
      %p253 = scmp.ne.s32.totalorder %s248, %s250
      %p254 = scmp.eq.s32.totalorder %s25, 0
      %p255 = por %p253, %p254
      %p256 = scmp.ne.s32.totalorder %s248, %s250
      %p257 = scmp.eq.s32.totalorder %s30, 1
      %p258 = por %p256, %p257
      %p259 = scmp.ne.s32.totalorder %s250, %s251
      %p260 = scmp.eq.s32.totalorder %s30, 0
      %p261 = por %p259, %p260
      %p262 = scmp.ne.s32.totalorder %s250, %s251
      %p263 = scmp.eq.s32.totalorder %s31, 1
      %p264 = por %p262, %p263
      %p266 = scmp.ne.s32.totalorder %s251, %s265
      %p267 = scmp.eq.s32.totalorder %s31, 0
      %p268 = por %p266, %p267
      %s270 = sadd.s32 %s269, 1
      %p273 = scmp.eq.s32.totalorder %s25, 1
      %p274 = scmp.ne.s32.totalorder %s269, %s271
      %p275 = scmp.eq.s32.totalorder %s25, 0
      %p276 = por %p274, %p275
      %p277 = scmp.ne.s32.totalorder %s269, %s271
      %p278 = scmp.eq.s32.totalorder %s30, 1
      %p279 = por %p277, %p278
      %p280 = scmp.ne.s32.totalorder %s271, %s272
      %p281 = scmp.eq.s32.totalorder %s30, 0
      %p282 = por %p280, %p281
      %p283 = scmp.ne.s32.totalorder %s271, %s272
      %p284 = scmp.eq.s32.totalorder %s31, 1
      %p285 = por %p283, %p284
      %p287 = scmp.ne.s32.totalorder %s272, %s286
      %p288 = scmp.eq.s32.totalorder %s31, 0
      %p289 = por %p287, %p288
      %s291 = sadd.s32 %s290, 1
      %p294 = scmp.eq.s32.totalorder %s25, 1
      %p295 = scmp.ne.s32.totalorder %s290, %s292
      %p296 = scmp.eq.s32.totalorder %s25, 0
      %p297 = por %p295, %p296
      %p298 = scmp.ne.s32.totalorder %s290, %s292
      %p299 = scmp.eq.s32.totalorder %s30, 1
      %p300 = por %p298, %p299
      %p301 = scmp.ne.s32.totalorder %s292, %s293
      %p302 = scmp.eq.s32.totalorder %s30, 0
      %p303 = por %p301, %p302
      %p304 = scmp.ne.s32.totalorder %s292, %s293
      %p305 = scmp.eq.s32.totalorder %s31, 1
      %p306 = por %p304, %p305
      %p308 = scmp.ne.s32.totalorder %s293, %s307
      %p309 = scmp.eq.s32.totalorder %s31, 0
      %p310 = por %p308, %p309
      %s312 = sadd.s32 %s311, 1
      %p315 = scmp.eq.s32.totalorder %s25, 1
      %p316 = scmp.ne.s32.totalorder %s311, %s313
      %p317 = scmp.eq.s32.totalorder %s25, 0
      %p318 = por %p316, %p317
      %p319 = scmp.ne.s32.totalorder %s311, %s313
      %p320 = scmp.eq.s32.totalorder %s30, 1
      %p321 = por %p319, %p320
      %p322 = scmp.ne.s32.totalorder %s313, %s314
      %p323 = scmp.eq.s32.totalorder %s30, 0
      %p324 = por %p322, %p323
      %p325 = scmp.ne.s32.totalorder %s313, %s314
      %p326 = scmp.eq.s32.totalorder %s31, 1
      %p327 = por %p325, %p326
      %p329 = scmp.ne.s32.totalorder %s314, %s328
      %p330 = scmp.eq.s32.totalorder %s31, 0
      %p331 = por %p329, %p330
      %s333 = sadd.s32 %s332, 1
      %p336 = scmp.eq.s32.totalorder %s25, 1
      %p337 = scmp.ne.s32.totalorder %s332, %s334
      %p338 = scmp.eq.s32.totalorder %s25, 0
      %p339 = por %p337, %p338
      %p340 = scmp.ne.s32.totalorder %s332, %s334
      %p341 = scmp.eq.s32.totalorder %s30, 1
      %p342 = por %p340, %p341
      %p343 = scmp.ne.s32.totalorder %s334, %s335
      %p344 = scmp.eq.s32.totalorder %s30, 0
      %p345 = por %p343, %p344
      %p346 = scmp.ne.s32.totalorder %s334, %s335
      %p347 = scmp.eq.s32.totalorder %s31, 1
      %p348 = por %p346, %p347
      %p350 = scmp.ne.s32.totalorder %s335, %s349
      %p351 = scmp.eq.s32.totalorder %s31, 0
      %p352 = por %p350, %p351
      %s354 = sadd.s32 %s353, 1
      %p357 = scmp.eq.s32.totalorder %s25, 1
      %p358 = scmp.ne.s32.totalorder %s353, %s355
      %p359 = scmp.eq.s32.totalorder %s25, 0
      %p360 = por %p358, %p359
      %p361 = scmp.ne.s32.totalorder %s353, %s355
      %p362 = scmp.eq.s32.totalorder %s30, 1
      %p363 = por %p361, %p362
      %p364 = scmp.ne.s32.totalorder %s355, %s356
      %p365 = scmp.eq.s32.totalorder %s30, 0
      %p366 = por %p364, %p365
      %p367 = scmp.ne.s32.totalorder %s355, %s356
      %p368 = scmp.eq.s32.totalorder %s31, 1
      %p369 = por %p367, %p368
      %p371 = scmp.ne.s32.totalorder %s356, %s370
      %p372 = scmp.eq.s32.totalorder %s31, 0
      %p373 = por %p371, %p372
      %s375 = sadd.s32 %s374, 1
      %p378 = scmp.eq.s32.totalorder %s25, 1
      %p379 = scmp.ne.s32.totalorder %s374, %s376
      %p380 = scmp.eq.s32.totalorder %s25, 0
      %p381 = por %p379, %p380
      %p382 = scmp.ne.s32.totalorder %s374, %s376
      %p383 = scmp.eq.s32.totalorder %s30, 1
      %p384 = por %p382, %p383
      %p385 = scmp.ne.s32.totalorder %s376, %s377
      %p386 = scmp.eq.s32.totalorder %s30, 0
      %p387 = por %p385, %p386
      %p388 = scmp.ne.s32.totalorder %s376, %s377
      %p389 = scmp.eq.s32.totalorder %s31, 1
      %p390 = por %p388, %p389
      %p392 = scmp.ne.s32.totalorder %s377, %s391
      %p393 = scmp.eq.s32.totalorder %s31, 0
      %p394 = por %p392, %p393
      %s395 = ssub.s32 %s25, %s32
      %p396 = scmp.eq.s32.totalorder %s395, 0
      %s398 = sadd.s32 %s397, 1
      %s399 = scalar_select %p396, %s397, %s398
      %p402 = pneg %p396
      %p403 = scmp.eq.s32.totalorder %s25, 1
      %p404 = por %p402, %p403
      %p405 = scmp.ne.s32.totalorder %s397, %s400
      %p406 = scmp.eq.s32.totalorder %s25, 0
      %p407 = por %p405, %p406
      %p408 = scmp.ne.s32.totalorder %s397, %s400
      %p409 = scmp.eq.s32.totalorder %s30, 1
      %p410 = por %p408, %p409
      %p411 = scmp.ne.s32.totalorder %s400, %s401
      %p412 = scmp.eq.s32.totalorder %s30, 0
      %p413 = por %p411, %p412
      %p414 = scmp.ne.s32.totalorder %s400, %s401
      %p415 = scmp.eq.s32.totalorder %s31, 1
      %p416 = por %p414, %p415
      %p418 = scmp.ne.s32.totalorder %s401, %s417
      %p419 = scmp.eq.s32.totalorder %s31, 0
      %p420 = por %p418, %p419
      %p421 = scmp.le.s32.totalorder 1, %s25
      %p422 = scmp.lt.s32.totalorder %s25, 3
      %p423 = pnand %p421, %p422
      %p424 = pneg %p423
      // Predicated region
      $region9: #{transformer_forward.1} parent=5 // pred_check
        _
      $region10: #{transformer_forward.1} parent=5 // pred_check_branch
        %426 = sbr.rel (%p423) target = $region12
      $region11: #{transformer_forward.1} parent=5 // pred_region
        %s427 = ssub.s32 %s25, 1
        // Predicated region
        $region13: #{transformer_forward.1} parent=11 // pred_check
          %p428 = pneg %p72
        $region14: #{transformer_forward.1} parent=11 // pred_check_branch
          %430 = sbr.rel (%p428) target = $region16
        $region15: #{transformer_forward.1} parent=11 // pred_region
          _
        $region16: #{transformer_forward.1} parent=11 // pred_fallthru
          _
        // Predicated region
        $region17: #{transformer_forward.1} parent=11 // pred_check
          %p431 = pneg %p93
        $region18: #{transformer_forward.1} parent=11 // pred_check_branch
          %433 = sbr.rel (%p431) target = $region20
        $region19: #{transformer_forward.1} parent=11 // pred_region
          _
        $region20: #{transformer_forward.1} parent=11 // pred_fallthru
          _
        // Predicated region
        $region21: #{transformer_forward.1} parent=11 // pred_check
          %p434 = pneg %p114
        $region22: #{transformer_forward.1} parent=11 // pred_check_branch
          %436 = sbr.rel (%p434) target = $region24
        $region23: #{transformer_forward.1} parent=11 // pred_region
          _
        $region24: #{transformer_forward.1} parent=11 // pred_fallthru
          _
        // Predicated region
        $region25: #{transformer_forward.1} parent=11 // pred_check
          %p437 = pneg %p135
        $region26: #{transformer_forward.1} parent=11 // pred_check_branch
          %439 = sbr.rel (%p437) target = $region28
        $region27: #{transformer_forward.1} parent=11 // pred_region
          _
        $region28: #{transformer_forward.1} parent=11 // pred_fallthru
          _
        // Predicated region
        $region29: #{transformer_forward.1} parent=11 // pred_check
          %p440 = pneg %p156
        $region30: #{transformer_forward.1} parent=11 // pred_check_branch
          %442 = sbr.rel (%p440) target = $region32
        $region31: #{transformer_forward.1} parent=11 // pred_region
          _
        $region32: #{transformer_forward.1} parent=11 // pred_fallthru
          _
        // Predicated region
        $region33: #{transformer_forward.1} parent=11 // pred_check
          %p443 = pneg %p177
        $region34: #{transformer_forward.1} parent=11 // pred_check_branch
          %445 = sbr.rel (%p443) target = $region36
        $region35: #{transformer_forward.1} parent=11 // pred_region
          _
        $region36: #{transformer_forward.1} parent=11 // pred_fallthru
          _
        // Predicated region
        $region37: #{transformer_forward.1} parent=11 // pred_check
          %p446 = pneg %p198
        $region38: #{transformer_forward.1} parent=11 // pred_check_branch
          %448 = sbr.rel (%p446) target = $region40
        $region39: #{transformer_forward.1} parent=11 // pred_region
          _
        $region40: #{transformer_forward.1} parent=11 // pred_fallthru
          _
        // Predicated region
        $region41: #{transformer_forward.1} parent=11 // pred_check
          %p449 = pneg %p219
        $region42: #{transformer_forward.1} parent=11 // pred_check_branch
          %451 = sbr.rel (%p449) target = $region44
        $region43: #{transformer_forward.1} parent=11 // pred_region
          %s453 = ssub.s32 32, 32
          %454 = vsyncadd [#allocation3], %s453
          %s455 = sshll.u32 [#allocation2], 4
          %s456 = int_to_ptr.vmem [resolvable:$true] %s455
          %461 = dma.hbm_to_vmem [thread:$0]  %s8, 32, %s456, [#allocation3], 16, 16, 1
        $region44: #{transformer_forward.1} parent=11 // pred_fallthru
          _
        // Predicated region
        $region45: #{transformer_forward.1} parent=11 // pred_check
          %p462 = pneg %p240
        $region46: #{transformer_forward.1} parent=11 // pred_check_branch
          %464 = sbr.rel (%p462) target = $region48
        $region47: #{transformer_forward.1} parent=11 // pred_region
          _
        $region48: #{transformer_forward.1} parent=11 // pred_fallthru
          _
        // Predicated region
        $region49: #{transformer_forward.1} parent=11 // pred_check
          %p465 = pneg %p261
        $region50: #{transformer_forward.1} parent=11 // pred_check_branch
          %467 = sbr.rel (%p465) target = $region52
        $region51: #{transformer_forward.1} parent=11 // pred_region
          %s469 = ssub.s32 32, 32
          %470 = vsyncadd [#allocation5], %s469
          %s471 = sshll.u32 [#allocation4], 4
          %s472 = int_to_ptr.vmem [resolvable:$true] %s471
          %477 = dma.hbm_to_vmem [thread:$0]  %s10, 32, %s472, [#allocation5], 16, 16, 1
        $region52: #{transformer_forward.1} parent=11 // pred_fallthru
          _
        // Predicated region
        $region53: #{transformer_forward.1} parent=11 // pred_check
          %p478 = pneg %p282
        $region54: #{transformer_forward.1} parent=11 // pred_check_branch
          %480 = sbr.rel (%p478) target = $region56
        $region55: #{transformer_forward.1} parent=11 // pred_region
          _
        $region56: #{transformer_forward.1} parent=11 // pred_fallthru
          _
        // Predicated region
        $region57: #{transformer_forward.1} parent=11 // pred_check
          %p481 = pneg %p303
        $region58: #{transformer_forward.1} parent=11 // pred_check_branch
          %483 = sbr.rel (%p481) target = $region60
        $region59: #{transformer_forward.1} parent=11 // pred_region
          _
        $region60: #{transformer_forward.1} parent=11 // pred_fallthru
          _
        // Predicated region
        $region61: #{transformer_forward.1} parent=11 // pred_check
          %p484 = pneg %p324
        $region62: #{transformer_forward.1} parent=11 // pred_check_branch
          %486 = sbr.rel (%p484) target = $region64
        $region63: #{transformer_forward.1} parent=11 // pred_region
          _
        $region64: #{transformer_forward.1} parent=11 // pred_fallthru
          _
        // Predicated region
        $region65: #{transformer_forward.1} parent=11 // pred_check
          %p487 = pneg %p345
        $region66: #{transformer_forward.1} parent=11 // pred_check_branch
          %489 = sbr.rel (%p487) target = $region68
        $region67: #{transformer_forward.1} parent=11 // pred_region
          _
        $region68: #{transformer_forward.1} parent=11 // pred_fallthru
          _
        // Predicated region
        $region69: #{transformer_forward.1} parent=11 // pred_check
          %p490 = pneg %p366
        $region70: #{transformer_forward.1} parent=11 // pred_check_branch
          %492 = sbr.rel (%p490) target = $region72
        $region71: #{transformer_forward.1} parent=11 // pred_region
          _
        $region72: #{transformer_forward.1} parent=11 // pred_fallthru
          _
        // Predicated region
        $region73: #{transformer_forward.1} parent=11 // pred_check
          %p493 = pneg %p387
        $region74: #{transformer_forward.1} parent=11 // pred_check_branch
          %495 = sbr.rel (%p493) target = $region76
        $region75: #{transformer_forward.1} parent=11 // pred_region
          _
        $region76: #{transformer_forward.1} parent=11 // pred_fallthru
          _
      $region12: #{transformer_forward.1} parent=5 // pred_fallthru
        _
      %p496 = scmp.lt.s32.totalorder %s25, 2
      // Predicated region
      $region77: #{transformer_forward.1} parent=5 // pred_check
        %p497 = pneg %p496
      $region78: #{transformer_forward.1} parent=5 // pred_check_branch
        %499 = sbr.rel (%p497) target = $region80
      $region79: #{transformer_forward.1} parent=5 // pred_region
        // Predicated region
        $region81: #{transformer_forward.1} parent=79 // pred_check
          %p500 = pneg %p45
        $region82: #{transformer_forward.1} parent=79 // pred_check_branch
          %502 = sbr.rel (%p500) target = $region84
        $region83: #{transformer_forward.1} parent=79 // pred_region
          %p503 = scmp.lt.s32.totalorder %s25, 1
          %s504 = scalar_select %p503, %s25, 1
          %s505 = smul.addr %s504, 8
          %s506 = scalar_lea.vmem %s0, %s505
        $region84: #{transformer_forward.1} parent=79 // pred_fallthru
          _
      $region80: #{transformer_forward.1} parent=5 // pred_fallthru
        _
      %p507 = scmp.le.s32.totalorder 1, %s25
      %p508 = scmp.lt.s32.totalorder %s25, 3
      %p509 = pnand %p507, %p508
      %p510 = pneg %p509
      // Predicated region
      $region85: #{transformer_forward.1} parent=5 // pred_check
        _
      $region86: #{transformer_forward.1} parent=5 // pred_check_branch
        %512 = sbr.rel (%p509) target = $region88
      $region87: #{transformer_forward.1} parent=5 // pred_region
        %s513 = ssub.s32 %s25, 1
        // Predicated region
        $region89: #{transformer_forward.1} parent=87 // pred_check
          %p514 = pneg %p219
        $region90: #{transformer_forward.1} parent=87 // pred_check_branch
          %516 = sbr.rel (%p514) target = $region92
        $region91: #{transformer_forward.1} parent=87 // pred_region
          %517 = dma.done [#allocation3], 32
        $region92: #{transformer_forward.1} parent=87 // pred_fallthru
          _
        // Predicated region
        $region93: #{transformer_forward.1} parent=87 // pred_check
          %p518 = pneg %p261
        $region94: #{transformer_forward.1} parent=87 // pred_check_branch
          %520 = sbr.rel (%p518) target = $region96
        $region95: #{transformer_forward.1} parent=87 // pred_region
          %521 = dma.done [#allocation5], 32
        $region96: #{transformer_forward.1} parent=87 // pred_fallthru
          _
        %p522 = scmp.lt.s32.totalorder %s30, 1
        %s523 = scalar_select %p522, %s30, 1
        %s524 = smul.addr %s523, 8
        %s525 = scalar_lea.vmem %s0, %s524
        %p526 = pneg %p51
        %p527 = pneg %p48
        %p528 = pneg %p72
        %p529 = pneg %p69
        %p530 = pneg %p93
        %p531 = pneg %p90
        %p532 = pneg %p114
        %p533 = pneg %p111
        %p534 = pneg %p135
        %p535 = pneg %p132
        %p536 = pneg %p156
        %p537 = pneg %p153
        %p538 = pneg %p177
        %p539 = pneg %p174
        %p540 = pneg %p198
        %p541 = pneg %p195
        %p542 = pneg %p219
        %p543 = pneg %p216
        %p544 = pneg %p240
        %p545 = pneg %p237
        %p546 = pneg %p261
        %p547 = pneg %p258
        %p548 = pneg %p282
        %p549 = pneg %p279
        %p550 = pneg %p303
        %p551 = pneg %p300
        %p552 = pneg %p324
        %p553 = pneg %p321
        %p554 = pneg %p345
        %p555 = pneg %p342
        %p556 = pneg %p366
        %p557 = pneg %p363
        %p558 = pneg %p387
        %p559 = pneg %p384
        %p560 = pneg %p413
        %p561 = pneg %p410
        %p562 = scmp.lt.s32.totalorder %s30, 1
        %s563 = scalar_select %p562, %s30, 1
        %s564 = smul.addr %s563, 8
        %s565 = scalar_lea.vmem %s17, %s564
        %p566 = scmp.lt.s32.totalorder %s30, 1
        %s567 = scalar_select %p566, %s30, 1
        %s568 = smul.addr %s567, 8
        %s569 = scalar_lea.vmem %s0, %s568
        %p570 = scmp.lt.s32.totalorder %s30, 1
        %s571 = scalar_select %p570, %s30, 1
        %s572 = smul.addr %s571, 8
        %s573 = scalar_lea.vmem %s17, %s572
        %v574 = vld [vmem:[%s569] sm:$0xff]
        %v575 = vlaneseq
        %v576 = vand.u32 %v575, 127
        %577 = vset.pattern.permute.xlu0 0
        %578 = vperm.xlu0 %577, %v574
        %v579 = vpop.permute.xlu0 %578
        %vm580 = vcmp.eq.s32.totalorder %v579, %v576
        %v581 = vsel %vm580, 1, 0
        %v582 = vcvt.s32.f32 %v581
        %v583 = vld [vmem:[%s1] sm:$0xff]
        %v584 = vld [vmem:[%s1 + $0x8] sm:$0xff]
        %v585 = vld [vmem:[%s1 + $0x10] sm:$0xff]
        %v586 = vld [vmem:[%s1 + $0x18] sm:$0xff]
        %vm587 = vcmask 261120
        %v589 = vsel %vm587, %v582, 0
        %591 = vmatprep.subr.mxu0 0.0
        %592 = vmatpush1.msra.mxu0 0.0
        %593 = vmatprep.subr.mxu0 0.0
        %594 = vmatpush1.msra.mxu0 0.0
        %595 = vmatprep.subr.mxu0 0.0
        %596 = vmatpush1.msra.mxu0 0.0
        %597 = vmatprep.subr.mxu0 0.0
        %598 = vmatpush1.msra.mxu0 0.0
        %599 = vmatprep.subr.mxu0 0.0
        %600 = vmatpush1.msra.mxu0 0.0
        %601 = vmatprep.subr.mxu0 0.0
        %602 = vmatpush1.msra.mxu0 0.0
        %603 = vmatprep.subr.mxu0 0.0
        %604 = vmatpush1.msra.mxu0 0.0
        %605 = vmatprep.subr.mxu0 0.0
        %606 = vmatpush1.msra.mxu0 0.0
        %607 = vmatprep.subr.mxu0 0.0
        %608 = vmatpush1.msra.mxu0 0.0
        %609 = vmatprep.subr.mxu0 0.0
        %610 = vmatpush1.msra.mxu0 0.0
        %611 = vmatprep.subr.mxu0 0.0
        %612 = vmatpush1.msra.mxu0 0.0
        %613 = vmatprep.subr.mxu0 0.0
        %614 = vmatpush1.msra.mxu0 0.0
        %615 = vmatprep.subr.mxu0 0.0
        %616 = vmatpush1.msra.mxu0 %v586
        %617 = vmatprep.subr.mxu0 0.0
        %618 = vmatpush1.msra.mxu0 %v585
        %619 = vmatprep.subr.mxu0 0.0
        %620 = vmatpush1.msra.mxu0 %v584
        %621 = vmatprep.subr.mxu0 0.0
        %622 = vmatpush1.msra.mxu0 %v583
        %623 = vmatprep.subr.mxu0 0.0
        %624 = vmatpush2.msra.mxu0 0.0
        %625 = vmatprep.subr.mxu0 0.0
        %626 = vmatpush2.msra.mxu0 0.0
        %627 = vmatprep.subr.mxu0 0.0
        %628 = vmatpush2.msra.mxu0 0.0
        %629 = vmatprep.subr.mxu0 0.0
        %630 = vmatpush2.msra.mxu0 0.0
        %631 = vmatprep.subr.mxu0 0.0
        %632 = vmatpush2.msra.mxu0 0.0
        %633 = vmatprep.subr.mxu0 0.0
        %634 = vmatpush2.msra.mxu0 0.0
        %635 = vmatprep.subr.mxu0 0.0
        %636 = vmatpush2.msra.mxu0 0.0
        %637 = vmatprep.subr.mxu0 0.0
        %638 = vmatpush2.msra.mxu0 0.0
        %639 = vmatprep.subr.mxu0 0.0
        %640 = vmatpush2.msra.mxu0 0.0
        %641 = vmatprep.subr.mxu0 0.0
        %642 = vmatpush2.msra.mxu0 0.0
        %643 = vmatprep.subr.mxu0 0.0
        %644 = vmatpush2.msra.mxu0 0.0
        %645 = vmatprep.subr.mxu0 0.0
        %646 = vmatpush2.msra.mxu0 0.0
        %647 = vmatprep.subr.mxu0 0.0
        %648 = vmatpush2.msra.mxu0 0.0
        %649 = vmatprep.subr.mxu0 0.0
        %650 = vmatpush2.msra.mxu0 0.0
        %651 = vmatprep.subr.mxu0 0.0
        %652 = vmatpush2.msra.mxu0 0.0
        %653 = vmatprep.subr.mxu0 0.0
        %654 = vmatpush2.msra.mxu0 0.0
        %655 = vmatprep.mubr.f32.mxu0 0.0
        %656 = vmatmul.mubr.f32.gmra.mxu0 %v589
        %v657 = vpop.f32.mrf.mxu0
        %v658 = vadd.f32 0.0, %v657
        %v659 = vpop.f32.mrf.mxu0
        %660 = vdwg.mxu0
        %v661 = vmul.f32 %v658, 5.656854
        %v662 = vld [vmem:[%s2] sm:$0xff]
        %v663 = vadd.f32 %v661, %v662
        %v664 = vlaneseq
        %v665 = vshrl.u32 %v664, 7
        %vm666 = vcmp.ge.s32.totalorder %v665, %v576
        %v667 = vsel %vm666, 0.0, -1e+30
        %v668 = vld [vmem:[%s3] sm:$0xff]
        %v669 = vld [vmem:[%s3 + $0x8] sm:$0xff]
        %v670 = vld [vmem:[%s3 + $0x10] sm:$0xff]
        %v671 = vld [vmem:[%s3 + $0x18] sm:$0xff]
        %v672 = vld [vmem:[%s4] sm:$0x1]
        %v674 = vlaneseq
        %v675 = vshrl.u32 %v674, 7
        %v676 = vsub.s32 0, %v675
        %v677 = vrot.slane %v672, %v676
        %v680 = vsel %vm587, %v663, 0
        %682 = vmatprep.subr.mxu0 0.0
        %683 = vmatpush1.msra.mxu0 0.0
        %684 = vmatprep.subr.mxu0 0.0
        %685 = vmatpush1.msra.mxu0 0.0
        %686 = vmatprep.subr.mxu0 0.0
        %687 = vmatpush1.msra.mxu0 0.0
        %688 = vmatprep.subr.mxu0 0.0
        %689 = vmatpush1.msra.mxu0 0.0
        %690 = vmatprep.subr.mxu0 0.0
        %691 = vmatpush1.msra.mxu0 0.0
        %692 = vmatprep.subr.mxu0 0.0
        %693 = vmatpush1.msra.mxu0 0.0
        %694 = vmatprep.subr.mxu0 0.0
        %695 = vmatpush1.msra.mxu0 0.0
        %696 = vmatprep.subr.mxu0 0.0
        %697 = vmatpush1.msra.mxu0 0.0
        %698 = vmatprep.subr.mxu0 0.0
        %699 = vmatpush1.msra.mxu0 0.0
        %700 = vmatprep.subr.mxu0 0.0
        %701 = vmatpush1.msra.mxu0 0.0
        %702 = vmatprep.subr.mxu0 0.0
        %703 = vmatpush1.msra.mxu0 0.0
        %704 = vmatprep.subr.mxu0 0.0
        %705 = vmatpush1.msra.mxu0 0.0
        %706 = vmatprep.subr.mxu0 0.0
        %707 = vmatpush1.msra.mxu0 %v671
        %708 = vmatprep.subr.mxu0 0.0
        %709 = vmatpush1.msra.mxu0 %v670
        %710 = vmatprep.subr.mxu0 0.0
        %711 = vmatpush1.msra.mxu0 %v669
        %712 = vmatprep.subr.mxu0 0.0
        %713 = vmatpush1.msra.mxu0 %v668
        %714 = vmatprep.subr.mxu0 0.0
        %715 = vmatpush2.msra.mxu0 0.0
        %716 = vmatprep.subr.mxu0 0.0
        %717 = vmatpush2.msra.mxu0 0.0
        %718 = vmatprep.subr.mxu0 0.0
        %719 = vmatpush2.msra.mxu0 0.0
        %720 = vmatprep.subr.mxu0 0.0
        %721 = vmatpush2.msra.mxu0 0.0
        %722 = vmatprep.subr.mxu0 0.0
        %723 = vmatpush2.msra.mxu0 0.0
        %724 = vmatprep.subr.mxu0 0.0
        %725 = vmatpush2.msra.mxu0 0.0
        %726 = vmatprep.subr.mxu0 0.0
        %727 = vmatpush2.msra.mxu0 0.0
        %728 = vmatprep.subr.mxu0 0.0
        %729 = vmatpush2.msra.mxu0 0.0
        %730 = vmatprep.subr.mxu0 0.0
        %731 = vmatpush2.msra.mxu0 0.0
        %732 = vmatprep.subr.mxu0 0.0
        %733 = vmatpush2.msra.mxu0 0.0
        %734 = vmatprep.subr.mxu0 0.0
        %735 = vmatpush2.msra.mxu0 0.0
        %736 = vmatprep.subr.mxu0 0.0
        %737 = vmatpush2.msra.mxu0 0.0
        %738 = vmatprep.subr.mxu0 0.0
        %739 = vmatpush2.msra.mxu0 0.0
        %740 = vmatprep.subr.mxu0 0.0
        %741 = vmatpush2.msra.mxu0 0.0
        %742 = vmatprep.subr.mxu0 0.0
        %743 = vmatpush2.msra.mxu0 0.0
        %744 = vmatprep.subr.mxu0 0.0
        %745 = vmatpush2.msra.mxu0 0.0
        %746 = vmatprep.mubr.f32.mxu0 0.0
        %747 = vmatmul.mubr.f32.gmra.mxu0 %v680
        %v748 = vpop.f32.mrf.mxu0
        %v749 = vadd.f32 %v677, %v748
        %v750 = vpop.f32.mrf.mxu0
        %751 = vdwg.mxu0
        %v752 = vmul.f32 %v749, 0.25
        %754 = vrot.lane.b32.xlu0 %v749, 96
        %v755 = vpop.permute.xlu0 %754
        %vm756 = vcmask 130048
        %v758 = vsel %vm756, %v752, 0
        %v760 = vsel %vm756, %v755, 0
        %762 = vmatprep.subr.mxu0 0.0
        %763 = vmatpush1.xpose.msra.mxu0 0.0
        %764 = vmatprep.subr.mxu0 0.0
        %765 = vmatpush1.xpose.msra.mxu0 0.0
        %766 = vmatprep.subr.mxu0 0.0
        %767 = vmatpush1.xpose.msra.mxu0 0.0
        %768 = vmatprep.subr.mxu0 0.0
        %769 = vmatpush1.xpose.msra.mxu0 0.0
        %770 = vmatprep.subr.mxu0 0.0
        %771 = vmatpush1.xpose.msra.mxu0 0.0
        %772 = vmatprep.subr.mxu0 0.0
        %773 = vmatpush1.xpose.msra.mxu0 0.0
        %774 = vmatprep.subr.mxu0 0.0
        %775 = vmatpush1.xpose.msra.mxu0 0.0
        %776 = vmatprep.subr.mxu0 0.0
        %777 = vmatpush1.xpose.msra.mxu0 0.0
        %778 = vmatprep.subr.mxu0 0.0
        %779 = vmatpush1.xpose.msra.mxu0 0.0
        %780 = vmatprep.subr.mxu0 0.0
        %781 = vmatpush1.xpose.msra.mxu0 0.0
        %782 = vmatprep.subr.mxu0 0.0
        %783 = vmatpush1.xpose.msra.mxu0 0.0
        %784 = vmatprep.subr.mxu0 0.0
        %785 = vmatpush1.xpose.msra.mxu0 0.0
        %786 = vmatprep.subr.mxu0 0.0
        %787 = vmatpush1.xpose.msra.mxu0 0.0
        %788 = vmatprep.subr.mxu0 0.0
        %789 = vmatpush1.xpose.msra.mxu0 0.0
        %790 = vmatprep.subr.mxu0 0.0
        %791 = vmatpush1.xpose.msra.mxu0 0.0
        %792 = vmatprep.subr.mxu0 0.0
        %793 = vmatpush1.xpose.msra.mxu0 %v760
        %794 = vmatprep.subr.mxu0 0.0
        %795 = vmatpush2.xpose.msra.mxu0 0.0
        %796 = vmatprep.subr.mxu0 0.0
        %797 = vmatpush2.xpose.msra.mxu0 0.0
        %798 = vmatprep.subr.mxu0 0.0
        %799 = vmatpush2.xpose.msra.mxu0 0.0
        %800 = vmatprep.subr.mxu0 0.0
        %801 = vmatpush2.xpose.msra.mxu0 0.0
        %802 = vmatprep.subr.mxu0 0.0
        %803 = vmatpush2.xpose.msra.mxu0 0.0
        %804 = vmatprep.subr.mxu0 0.0
        %805 = vmatpush2.xpose.msra.mxu0 0.0
        %806 = vmatprep.subr.mxu0 0.0
        %807 = vmatpush2.xpose.msra.mxu0 0.0
        %808 = vmatprep.subr.mxu0 0.0
        %809 = vmatpush2.xpose.msra.mxu0 0.0
        %810 = vmatprep.subr.mxu0 0.0
        %811 = vmatpush2.xpose.msra.mxu0 0.0
        %812 = vmatprep.subr.mxu0 0.0
        %813 = vmatpush2.xpose.msra.mxu0 0.0
        %814 = vmatprep.subr.mxu0 0.0
        %815 = vmatpush2.xpose.msra.mxu0 0.0
        %816 = vmatprep.subr.mxu0 0.0
        %817 = vmatpush2.xpose.msra.mxu0 0.0
        %818 = vmatprep.subr.mxu0 0.0
        %819 = vmatpush2.xpose.msra.mxu0 0.0
        %820 = vmatprep.subr.mxu0 0.0
        %821 = vmatpush2.xpose.msra.mxu0 0.0
        %822 = vmatprep.subr.mxu0 0.0
        %823 = vmatpush2.xpose.msra.mxu0 0.0
        %824 = vmatprep.subr.mxu0 0.0
        %825 = vmatpush2.xpose.msra.mxu0 0.0
        %826 = vmatprep.mubr.f32.mxu0 0.0
        %827 = vmatmul.mubr.f32.gmra.mxu0 %v758
        %v828 = vpop.f32.mrf.mxu0
        %v829 = vadd.f32 %v667, %v828
        %v830 = vpop.f32.mrf.mxu0
        %831 = vdwg.mxu0
        %vm832 = vcmask 64512
        %v833 = vsel %vm832, %v829, -inf
        %834 = vmax.xlane.f32.xlu0 %v833
        %v835 = vpop.xlane.xlu0 %834
        %v836 = vsub.f32 %v829, %v835
        %v837 = vmul.f32 %v836, 1.442695
        %v838 = vpow.pop %v837
        %v839 = vsel %vm832, %v838, 0.0
        %840 = vadd.xlane.f32.xlu0 %v839
        %v841 = vpop.xlane.xlu0 %840
        %v842 = vrcp.pop %v841
        %v843 = vmul.f32 %v838, %v842
        %844 = vrot.lane.b32.xlu0 %v749, 64
        %v845 = vpop.permute.xlu0 %844
        %v848 = vsel %vm832, %v843, 0
        %850 = vmatprep.subr.mxu0 0.0
        %851 = vmatpush1.msra.mxu0 0.0
        %852 = vmatprep.subr.mxu0 0.0
        %853 = vmatpush1.msra.mxu0 0.0
        %854 = vmatprep.subr.mxu0 0.0
        %855 = vmatpush1.msra.mxu0 0.0
        %856 = vmatprep.subr.mxu0 0.0
        %857 = vmatpush1.msra.mxu0 0.0
        %858 = vmatprep.subr.mxu0 0.0
        %859 = vmatpush1.msra.mxu0 0.0
        %860 = vmatprep.subr.mxu0 0.0
        %861 = vmatpush1.msra.mxu0 0.0
        %862 = vmatprep.subr.mxu0 0.0
        %863 = vmatpush1.msra.mxu0 0.0
        %864 = vmatprep.subr.mxu0 0.0
        %865 = vmatpush1.msra.mxu0 0.0
        %866 = vmatprep.subr.mxu0 0.0
        %867 = vmatpush1.msra.mxu0 0.0
        %868 = vmatprep.subr.mxu0 0.0
        %869 = vmatpush1.msra.mxu0 0.0
        %870 = vmatprep.subr.mxu0 0.0
        %871 = vmatpush1.msra.mxu0 0.0
        %872 = vmatprep.subr.mxu0 0.0
        %873 = vmatpush1.msra.mxu0 0.0
        %874 = vmatprep.subr.mxu0 0.0
        %875 = vmatpush1.msra.mxu0 0.0
        %876 = vmatprep.subr.mxu0 0.0
        %877 = vmatpush1.msra.mxu0 0.0
        %878 = vmatprep.subr.mxu0 0.0
        %879 = vmatpush1.msra.mxu0 0.0
        %880 = vmatprep.subr.mxu0 0.0
        %881 = vmatpush1.msra.mxu0 %v845
        %882 = vmatprep.subr.mxu0 0.0
        %883 = vmatpush2.msra.mxu0 0.0
        %884 = vmatprep.subr.mxu0 0.0
        %885 = vmatpush2.msra.mxu0 0.0
        %886 = vmatprep.subr.mxu0 0.0
        %887 = vmatpush2.msra.mxu0 0.0
        %888 = vmatprep.subr.mxu0 0.0
        %889 = vmatpush2.msra.mxu0 0.0
        %890 = vmatprep.subr.mxu0 0.0
        %891 = vmatpush2.msra.mxu0 0.0
        %892 = vmatprep.subr.mxu0 0.0
        %893 = vmatpush2.msra.mxu0 0.0
        %894 = vmatprep.subr.mxu0 0.0
        %895 = vmatpush2.msra.mxu0 0.0
        %896 = vmatprep.subr.mxu0 0.0
        %897 = vmatpush2.msra.mxu0 0.0
        %898 = vmatprep.subr.mxu0 0.0
        %899 = vmatpush2.msra.mxu0 0.0
        %900 = vmatprep.subr.mxu0 0.0
        %901 = vmatpush2.msra.mxu0 0.0
        %902 = vmatprep.subr.mxu0 0.0
        %903 = vmatpush2.msra.mxu0 0.0
        %904 = vmatprep.subr.mxu0 0.0
        %905 = vmatpush2.msra.mxu0 0.0
        %906 = vmatprep.subr.mxu0 0.0
        %907 = vmatpush2.msra.mxu0 0.0
        %908 = vmatprep.subr.mxu0 0.0
        %909 = vmatpush2.msra.mxu0 0.0
        %910 = vmatprep.subr.mxu0 0.0
        %911 = vmatpush2.msra.mxu0 0.0
        %912 = vmatprep.subr.mxu0 0.0
        %913 = vmatpush2.msra.mxu0 0.0
        %914 = vmatprep.mubr.f32.mxu0 0.0
        %915 = vmatmul.mubr.f32.gmra.mxu0 %v848
        %v916 = vpop.f32.mrf.mxu0
        %v917 = vadd.f32 0.0, %v916
        %v918 = vpop.f32.mrf.mxu0
        %919 = vdwg.mxu0
        %920 = vrot.lane.b32.xlu0 %v752, 112
        %v921 = vpop.permute.xlu0 %920
        %922 = vrot.lane.b32.xlu0 %v749, 80
        %v923 = vpop.permute.xlu0 %922
        %v924 = vsel %vm756, %v921, 0
        %v926 = vsel %vm756, %v923, 0
        %928 = vmatprep.subr.mxu0 0.0
        %929 = vmatpush1.xpose.msra.mxu0 0.0
        %930 = vmatprep.subr.mxu0 0.0
        %931 = vmatpush1.xpose.msra.mxu0 0.0
        %932 = vmatprep.subr.mxu0 0.0
        %933 = vmatpush1.xpose.msra.mxu0 0.0
        %934 = vmatprep.subr.mxu0 0.0
        %935 = vmatpush1.xpose.msra.mxu0 0.0
        %936 = vmatprep.subr.mxu0 0.0
        %937 = vmatpush1.xpose.msra.mxu0 0.0
        %938 = vmatprep.subr.mxu0 0.0
        %939 = vmatpush1.xpose.msra.mxu0 0.0
        %940 = vmatprep.subr.mxu0 0.0
        %941 = vmatpush1.xpose.msra.mxu0 0.0
        %942 = vmatprep.subr.mxu0 0.0
        %943 = vmatpush1.xpose.msra.mxu0 0.0
        %944 = vmatprep.subr.mxu0 0.0
        %945 = vmatpush1.xpose.msra.mxu0 0.0
        %946 = vmatprep.subr.mxu0 0.0
        %947 = vmatpush1.xpose.msra.mxu0 0.0
        %948 = vmatprep.subr.mxu0 0.0
        %949 = vmatpush1.xpose.msra.mxu0 0.0
        %950 = vmatprep.subr.mxu0 0.0
        %951 = vmatpush1.xpose.msra.mxu0 0.0
        %952 = vmatprep.subr.mxu0 0.0
        %953 = vmatpush1.xpose.msra.mxu0 0.0
        %954 = vmatprep.subr.mxu0 0.0
        %955 = vmatpush1.xpose.msra.mxu0 0.0
        %956 = vmatprep.subr.mxu0 0.0
        %957 = vmatpush1.xpose.msra.mxu0 0.0
        %958 = vmatprep.subr.mxu0 0.0
        %959 = vmatpush1.xpose.msra.mxu0 %v926
        %960 = vmatprep.subr.mxu0 0.0
        %961 = vmatpush2.xpose.msra.mxu0 0.0
        %962 = vmatprep.subr.mxu0 0.0
        %963 = vmatpush2.xpose.msra.mxu0 0.0
        %964 = vmatprep.subr.mxu0 0.0
        %965 = vmatpush2.xpose.msra.mxu0 0.0
        %966 = vmatprep.subr.mxu0 0.0
        %967 = vmatpush2.xpose.msra.mxu0 0.0
        %968 = vmatprep.subr.mxu0 0.0
        %969 = vmatpush2.xpose.msra.mxu0 0.0
        %970 = vmatprep.subr.mxu0 0.0
        %971 = vmatpush2.xpose.msra.mxu0 0.0
        %972 = vmatprep.subr.mxu0 0.0
        %973 = vmatpush2.xpose.msra.mxu0 0.0
        %974 = vmatprep.subr.mxu0 0.0
        %975 = vmatpush2.xpose.msra.mxu0 0.0
        %976 = vmatprep.subr.mxu0 0.0
        %977 = vmatpush2.xpose.msra.mxu0 0.0
        %978 = vmatprep.subr.mxu0 0.0
        %979 = vmatpush2.xpose.msra.mxu0 0.0
        %980 = vmatprep.subr.mxu0 0.0
        %981 = vmatpush2.xpose.msra.mxu0 0.0
        %982 = vmatprep.subr.mxu0 0.0
        %983 = vmatpush2.xpose.msra.mxu0 0.0
        %984 = vmatprep.subr.mxu0 0.0
        %985 = vmatpush2.xpose.msra.mxu0 0.0
        %986 = vmatprep.subr.mxu0 0.0
        %987 = vmatpush2.xpose.msra.mxu0 0.0
        %988 = vmatprep.subr.mxu0 0.0
        %989 = vmatpush2.xpose.msra.mxu0 0.0
        %990 = vmatprep.subr.mxu0 0.0
        %991 = vmatpush2.xpose.msra.mxu0 0.0
        %992 = vmatprep.mubr.f32.mxu0 0.0
        %993 = vmatmul.mubr.f32.gmra.mxu0 %v924
        %v994 = vpop.f32.mrf.mxu0
        %v995 = vadd.f32 %v667, %v994
        %v996 = vpop.f32.mrf.mxu0
        %997 = vdwg.mxu0
        %v998 = vsel %vm832, %v995, -inf
        %999 = vmax.xlane.f32.xlu0 %v998
        %v1000 = vpop.xlane.xlu0 %999
        %v1001 = vsub.f32 %v995, %v1000
        %v1002 = vmul.f32 %v1001, 1.442695
        %v1003 = vpow.pop %v1002
        %v1004 = vsel %vm832, %v1003, 0.0
        %1005 = vadd.xlane.f32.xlu0 %v1004
        %v1006 = vpop.xlane.xlu0 %1005
        %v1007 = vrcp.pop %v1006
        %v1008 = vmul.f32 %v1003, %v1007
        %1009 = vrot.lane.b32.xlu0 %v749, 48
        %v1010 = vpop.permute.xlu0 %1009
        %v1013 = vsel %vm832, %v1008, 0
        %1015 = vmatprep.subr.mxu0 0.0
        %1016 = vmatpush1.msra.mxu0 0.0
        %1017 = vmatprep.subr.mxu0 0.0
        %1018 = vmatpush1.msra.mxu0 0.0
        %1019 = vmatprep.subr.mxu0 0.0
        %1020 = vmatpush1.msra.mxu0 0.0
        %1021 = vmatprep.subr.mxu0 0.0
        %1022 = vmatpush1.msra.mxu0 0.0
        %1023 = vmatprep.subr.mxu0 0.0
        %1024 = vmatpush1.msra.mxu0 0.0
        %1025 = vmatprep.subr.mxu0 0.0
        %1026 = vmatpush1.msra.mxu0 0.0
        %1027 = vmatprep.subr.mxu0 0.0
        %1028 = vmatpush1.msra.mxu0 0.0
        %1029 = vmatprep.subr.mxu0 0.0
        %1030 = vmatpush1.msra.mxu0 0.0
        %1031 = vmatprep.subr.mxu0 0.0
        %1032 = vmatpush1.msra.mxu0 0.0
        %1033 = vmatprep.subr.mxu0 0.0
        %1034 = vmatpush1.msra.mxu0 0.0
        %1035 = vmatprep.subr.mxu0 0.0
        %1036 = vmatpush1.msra.mxu0 0.0
        %1037 = vmatprep.subr.mxu0 0.0
        %1038 = vmatpush1.msra.mxu0 0.0
        %1039 = vmatprep.subr.mxu0 0.0
        %1040 = vmatpush1.msra.mxu0 0.0
        %1041 = vmatprep.subr.mxu0 0.0
        %1042 = vmatpush1.msra.mxu0 0.0
        %1043 = vmatprep.subr.mxu0 0.0
        %1044 = vmatpush1.msra.mxu0 0.0
        %1045 = vmatprep.subr.mxu0 0.0
        %1046 = vmatpush1.msra.mxu0 %v1010
        %1047 = vmatprep.subr.mxu0 0.0
        %1048 = vmatpush2.msra.mxu0 0.0
        %1049 = vmatprep.subr.mxu0 0.0
        %1050 = vmatpush2.msra.mxu0 0.0
        %1051 = vmatprep.subr.mxu0 0.0
        %1052 = vmatpush2.msra.mxu0 0.0
        %1053 = vmatprep.subr.mxu0 0.0
        %1054 = vmatpush2.msra.mxu0 0.0
        %1055 = vmatprep.subr.mxu0 0.0
        %1056 = vmatpush2.msra.mxu0 0.0
        %1057 = vmatprep.subr.mxu0 0.0
        %1058 = vmatpush2.msra.mxu0 0.0
        %1059 = vmatprep.subr.mxu0 0.0
        %1060 = vmatpush2.msra.mxu0 0.0
        %1061 = vmatprep.subr.mxu0 0.0
        %1062 = vmatpush2.msra.mxu0 0.0
        %1063 = vmatprep.subr.mxu0 0.0
        %1064 = vmatpush2.msra.mxu0 0.0
        %1065 = vmatprep.subr.mxu0 0.0
        %1066 = vmatpush2.msra.mxu0 0.0
        %1067 = vmatprep.subr.mxu0 0.0
        %1068 = vmatpush2.msra.mxu0 0.0
        %1069 = vmatprep.subr.mxu0 0.0
        %1070 = vmatpush2.msra.mxu0 0.0
        %1071 = vmatprep.subr.mxu0 0.0
        %1072 = vmatpush2.msra.mxu0 0.0
        %1073 = vmatprep.subr.mxu0 0.0
        %1074 = vmatpush2.msra.mxu0 0.0
        %1075 = vmatprep.subr.mxu0 0.0
        %1076 = vmatpush2.msra.mxu0 0.0
        %1077 = vmatprep.subr.mxu0 0.0
        %1078 = vmatpush2.msra.mxu0 0.0
        %1079 = vmatprep.mubr.f32.mxu0 0.0
        %1080 = vmatmul.mubr.f32.gmra.mxu0 %v1013
        %v1081 = vpop.f32.mrf.mxu0
        %v1082 = vadd.f32 0.0, %v1081
        %v1083 = vpop.f32.mrf.mxu0
        %1084 = vdwg.mxu0
        %1086 = vrot.lane.b32.xlu0 %v1082, 16
        %v1087 = vpop.permute.xlu0 %1086
        %v1089 = vsel %vm756, %v917, %v1087
        %v1090 = vld [vmem:[%s5] sm:$0xff]
        %v1091 = vld [vmem:[%s5 + $0x8] sm:$0xff]
        %v1092 = vld [vmem:[%s5 + $0x10] sm:$0xff]
        %v1093 = vld [vmem:[%s5 + $0x18] sm:$0xff]
        %v1094 = vld [vmem:[%s6] sm:$0x1]
        %v1096 = vlaneseq
        %v1097 = vshrl.u32 %v1096, 7
        %v1098 = vsub.s32 0, %v1097
        %v1099 = vrot.slane %v1094, %v1098
        %v1102 = vsel %vm587, %v1089, 0
        %1104 = vmatprep.subr.mxu0 0.0
        %1105 = vmatpush1.msra.mxu0 0.0
        %1106 = vmatprep.subr.mxu0 0.0
        %1107 = vmatpush1.msra.mxu0 0.0
        %1108 = vmatprep.subr.mxu0 0.0
        %1109 = vmatpush1.msra.mxu0 0.0
        %1110 = vmatprep.subr.mxu0 0.0
        %1111 = vmatpush1.msra.mxu0 0.0
        %1112 = vmatprep.subr.mxu0 0.0
        %1113 = vmatpush1.msra.mxu0 0.0
        %1114 = vmatprep.subr.mxu0 0.0
        %1115 = vmatpush1.msra.mxu0 0.0
        %1116 = vmatprep.subr.mxu0 0.0
        %1117 = vmatpush1.msra.mxu0 0.0
        %1118 = vmatprep.subr.mxu0 0.0
        %1119 = vmatpush1.msra.mxu0 0.0
        %1120 = vmatprep.subr.mxu0 0.0
        %1121 = vmatpush1.msra.mxu0 0.0
        %1122 = vmatprep.subr.mxu0 0.0
        %1123 = vmatpush1.msra.mxu0 0.0
        %1124 = vmatprep.subr.mxu0 0.0
        %1125 = vmatpush1.msra.mxu0 0.0
        %1126 = vmatprep.subr.mxu0 0.0
        %1127 = vmatpush1.msra.mxu0 0.0
        %1128 = vmatprep.subr.mxu0 0.0
        %1129 = vmatpush1.msra.mxu0 %v1093
        %1130 = vmatprep.subr.mxu0 0.0
        %1131 = vmatpush1.msra.mxu0 %v1092
        %1132 = vmatprep.subr.mxu0 0.0
        %1133 = vmatpush1.msra.mxu0 %v1091
        %1134 = vmatprep.subr.mxu0 0.0
        %1135 = vmatpush1.msra.mxu0 %v1090
        %1136 = vmatprep.subr.mxu0 0.0
        %1137 = vmatpush2.msra.mxu0 0.0
        %1138 = vmatprep.subr.mxu0 0.0
        %1139 = vmatpush2.msra.mxu0 0.0
        %1140 = vmatprep.subr.mxu0 0.0
        %1141 = vmatpush2.msra.mxu0 0.0
        %1142 = vmatprep.subr.mxu0 0.0
        %1143 = vmatpush2.msra.mxu0 0.0
        %1144 = vmatprep.subr.mxu0 0.0
        %1145 = vmatpush2.msra.mxu0 0.0
        %1146 = vmatprep.subr.mxu0 0.0
        %1147 = vmatpush2.msra.mxu0 0.0
        %1148 = vmatprep.subr.mxu0 0.0
        %1149 = vmatpush2.msra.mxu0 0.0
        %1150 = vmatprep.subr.mxu0 0.0
        %1151 = vmatpush2.msra.mxu0 0.0
        %1152 = vmatprep.subr.mxu0 0.0
        %1153 = vmatpush2.msra.mxu0 0.0
        %1154 = vmatprep.subr.mxu0 0.0
        %1155 = vmatpush2.msra.mxu0 0.0
        %1156 = vmatprep.subr.mxu0 0.0
        %1157 = vmatpush2.msra.mxu0 0.0
        %1158 = vmatprep.subr.mxu0 0.0
        %1159 = vmatpush2.msra.mxu0 0.0
        %1160 = vmatprep.subr.mxu0 0.0
        %1161 = vmatpush2.msra.mxu0 0.0
        %1162 = vmatprep.subr.mxu0 0.0
        %1163 = vmatpush2.msra.mxu0 0.0
        %1164 = vmatprep.subr.mxu0 0.0
        %1165 = vmatpush2.msra.mxu0 0.0
        %1166 = vmatprep.subr.mxu0 0.0
        %1167 = vmatpush2.msra.mxu0 0.0
        %1168 = vmatprep.mubr.f32.mxu0 0.0
        %1169 = vmatmul.mubr.f32.gmra.mxu0 %v1102
        %v1170 = vpop.f32.mrf.mxu0
        %v1171 = vadd.f32 %v1099, %v1170
        %v1172 = vpop.f32.mrf.mxu0
        %1173 = vdwg.mxu0
        %v1174 = vadd.f32 %v663, %v1171
        %v1175 = vld [vmem:[%s11] sm:$0x1]
        %v1176 = vld [vmem:[%s12] sm:$0x1]
        %v1177 = vsel %vm587, %v1174, 0.0
        %1178 = vadd.xlane.f32.xlu0 %v1177
        %v1179 = vpop.xlane.xlu0 %1178
        %v1180 = vrcp.pop 32.0
        %v1181 = vmul.f32 %v1179, %v1180
        %v1182 = vsub.f32 %v1174, %v1181
        %v1183 = vmul.f32 %v1182, %v1182
        %v1184 = vsel %vm587, %v1183, 0.0
        %1185 = vadd.xlane.f32.xlu0 %v1184
        %v1186 = vpop.xlane.xlu0 %1185
        %v1187 = vmul.f32 %v1186, %v1180
        %v1188 = vadd.f32 %v1187, 1e-05
        %v1189 = vrsqrt.pop %v1188
        %v1190 = vmul.f32 %v1182, %v1189
        %v1192 = vlaneseq
        %v1193 = vshrl.u32 %v1192, 7
        %v1194 = vsub.s32 0, %v1193
        %v1195 = vrot.slane %v1175, %v1194
        %v1197 = vmul.f32 %v1190, %v1195
        %v1199 = vlaneseq
        %v1200 = vshrl.u32 %v1199, 7
        %v1201 = vsub.s32 0, %v1200
        %v1202 = vrot.slane %v1176, %v1201
        %v1204 = vadd.f32 %v1197, %v1202
        %v1205 = vld [vmem:[%s7] sm:$0xff]
        %v1206 = vld [vmem:[%s7 + $0x8] sm:$0xff]
        %v1207 = vld [vmem:[%s7 + $0x10] sm:$0xff]
        %v1208 = vld [vmem:[%s7 + $0x18] sm:$0xff]
        %v1209 = vld [vmem:[#allocation2] sm:$0x1]
        %v1211 = vlaneseq
        %v1212 = vshrl.u32 %v1211, 7
        %v1213 = vsub.s32 0, %v1212
        %v1214 = vrot.slane %v1209, %v1213
        %v1217 = vsel %vm587, %v1204, 0
        %1219 = vmatprep.subr.mxu0 0.0
        %1220 = vmatpush1.msra.mxu0 0.0
        %1221 = vmatprep.subr.mxu0 0.0
        %1222 = vmatpush1.msra.mxu0 0.0
        %1223 = vmatprep.subr.mxu0 0.0
        %1224 = vmatpush1.msra.mxu0 0.0
        %1225 = vmatprep.subr.mxu0 0.0
        %1226 = vmatpush1.msra.mxu0 0.0
        %1227 = vmatprep.subr.mxu0 0.0
        %1228 = vmatpush1.msra.mxu0 0.0
        %1229 = vmatprep.subr.mxu0 0.0
        %1230 = vmatpush1.msra.mxu0 0.0
        %1231 = vmatprep.subr.mxu0 0.0
        %1232 = vmatpush1.msra.mxu0 0.0
        %1233 = vmatprep.subr.mxu0 0.0
        %1234 = vmatpush1.msra.mxu0 0.0
        %1235 = vmatprep.subr.mxu0 0.0
        %1236 = vmatpush1.msra.mxu0 0.0
        %1237 = vmatprep.subr.mxu0 0.0
        %1238 = vmatpush1.msra.mxu0 0.0
        %1239 = vmatprep.subr.mxu0 0.0
        %1240 = vmatpush1.msra.mxu0 0.0
        %1241 = vmatprep.subr.mxu0 0.0
        %1242 = vmatpush1.msra.mxu0 0.0
        %1243 = vmatprep.subr.mxu0 0.0
        %1244 = vmatpush1.msra.mxu0 %v1208
        %1245 = vmatprep.subr.mxu0 0.0
        %1246 = vmatpush1.msra.mxu0 %v1207
        %1247 = vmatprep.subr.mxu0 0.0
        %1248 = vmatpush1.msra.mxu0 %v1206
        %1249 = vmatprep.subr.mxu0 0.0
        %1250 = vmatpush1.msra.mxu0 %v1205
        %1251 = vmatprep.subr.mxu0 0.0
        %1252 = vmatpush2.msra.mxu0 0.0
        %1253 = vmatprep.subr.mxu0 0.0
        %1254 = vmatpush2.msra.mxu0 0.0
        %1255 = vmatprep.subr.mxu0 0.0
        %1256 = vmatpush2.msra.mxu0 0.0
        %1257 = vmatprep.subr.mxu0 0.0
        %1258 = vmatpush2.msra.mxu0 0.0
        %1259 = vmatprep.subr.mxu0 0.0
        %1260 = vmatpush2.msra.mxu0 0.0
        %1261 = vmatprep.subr.mxu0 0.0
        %1262 = vmatpush2.msra.mxu0 0.0
        %1263 = vmatprep.subr.mxu0 0.0
        %1264 = vmatpush2.msra.mxu0 0.0
        %1265 = vmatprep.subr.mxu0 0.0
        %1266 = vmatpush2.msra.mxu0 0.0
        %1267 = vmatprep.subr.mxu0 0.0
        %1268 = vmatpush2.msra.mxu0 0.0
        %1269 = vmatprep.subr.mxu0 0.0
        %1270 = vmatpush2.msra.mxu0 0.0
        %1271 = vmatprep.subr.mxu0 0.0
        %1272 = vmatpush2.msra.mxu0 0.0
        %1273 = vmatprep.subr.mxu0 0.0
        %1274 = vmatpush2.msra.mxu0 0.0
        %1275 = vmatprep.subr.mxu0 0.0
        %1276 = vmatpush2.msra.mxu0 0.0
        %1277 = vmatprep.subr.mxu0 0.0
        %1278 = vmatpush2.msra.mxu0 0.0
        %1279 = vmatprep.subr.mxu0 0.0
        %1280 = vmatpush2.msra.mxu0 0.0
        %1281 = vmatprep.subr.mxu0 0.0
        %1282 = vmatpush2.msra.mxu0 0.0
        %1283 = vmatprep.mubr.f32.mxu0 0.0
        %1284 = vmatmul.mubr.f32.gmra.mxu0 %v1217
        %v1285 = vpop.f32.mrf.mxu0
        %v1286 = vadd.f32 %v1214, %v1285
        %v1287 = vpop.f32.mrf.mxu0
        %1288 = vdwg.mxu0
        %v1289 = vmax.f32 %v1286, 0.0
        %v1290 = vld [vmem:[%s9] sm:$0xff]
        %v1291 = vld [vmem:[%s9 + $0x8] sm:$0xff]
        %v1292 = vld [vmem:[%s9 + $0x10] sm:$0xff]
        %v1293 = vld [vmem:[%s9 + $0x18] sm:$0xff]
        %v1294 = vld [vmem:[%s9 + $0x20] sm:$0xff]
        %v1295 = vld [vmem:[%s9 + $0x28] sm:$0xff]
        %v1296 = vld [vmem:[%s9 + $0x30] sm:$0xff]
        %v1297 = vld [vmem:[%s9 + $0x38] sm:$0xff]
        %v1298 = vld [vmem:[#allocation4] sm:$0x1]
        %v1300 = vlaneseq
        %v1301 = vshrl.u32 %v1300, 7
        %v1302 = vsub.s32 0, %v1301
        %v1303 = vrot.slane %v1298, %v1302
        %vm1305 = vcmask 523264
        %v1307 = vsel %vm1305, %v1289, 0
        %1309 = vmatprep.subr.mxu0 0.0
        %1310 = vmatpush1.msra.mxu0 0.0
        %1311 = vmatprep.subr.mxu0 0.0
        %1312 = vmatpush1.msra.mxu0 0.0
        %1313 = vmatprep.subr.mxu0 0.0
        %1314 = vmatpush1.msra.mxu0 0.0
        %1315 = vmatprep.subr.mxu0 0.0
        %1316 = vmatpush1.msra.mxu0 0.0
        %1317 = vmatprep.subr.mxu0 0.0
        %1318 = vmatpush1.msra.mxu0 0.0
        %1319 = vmatprep.subr.mxu0 0.0
        %1320 = vmatpush1.msra.mxu0 0.0
        %1321 = vmatprep.subr.mxu0 0.0
        %1322 = vmatpush1.msra.mxu0 0.0
        %1323 = vmatprep.subr.mxu0 0.0
        %1324 = vmatpush1.msra.mxu0 0.0
        %1325 = vmatprep.subr.mxu0 0.0
        %1326 = vmatpush1.msra.mxu0 %v1297
        %1327 = vmatprep.subr.mxu0 0.0
        %1328 = vmatpush1.msra.mxu0 %v1296
        %1329 = vmatprep.subr.mxu0 0.0
        %1330 = vmatpush1.msra.mxu0 %v1295
        %1331 = vmatprep.subr.mxu0 0.0
        %1332 = vmatpush1.msra.mxu0 %v1294
        %1333 = vmatprep.subr.mxu0 0.0
        %1334 = vmatpush1.msra.mxu0 %v1293
        %1335 = vmatprep.subr.mxu0 0.0
        %1336 = vmatpush1.msra.mxu0 %v1292
        %1337 = vmatprep.subr.mxu0 0.0
        %1338 = vmatpush1.msra.mxu0 %v1291
        %1339 = vmatprep.subr.mxu0 0.0
        %1340 = vmatpush1.msra.mxu0 %v1290
        %1341 = vmatprep.subr.mxu0 0.0
        %1342 = vmatpush2.msra.mxu0 0.0
        %1343 = vmatprep.subr.mxu0 0.0
        %1344 = vmatpush2.msra.mxu0 0.0
        %1345 = vmatprep.subr.mxu0 0.0
        %1346 = vmatpush2.msra.mxu0 0.0
        %1347 = vmatprep.subr.mxu0 0.0
        %1348 = vmatpush2.msra.mxu0 0.0
        %1349 = vmatprep.subr.mxu0 0.0
        %1350 = vmatpush2.msra.mxu0 0.0
        %1351 = vmatprep.subr.mxu0 0.0
        %1352 = vmatpush2.msra.mxu0 0.0
        %1353 = vmatprep.subr.mxu0 0.0
        %1354 = vmatpush2.msra.mxu0 0.0
        %1355 = vmatprep.subr.mxu0 0.0
        %1356 = vmatpush2.msra.mxu0 0.0
        %1357 = vmatprep.subr.mxu0 0.0
        %1358 = vmatpush2.msra.mxu0 0.0
        %1359 = vmatprep.subr.mxu0 0.0
        %1360 = vmatpush2.msra.mxu0 0.0
        %1361 = vmatprep.subr.mxu0 0.0
        %1362 = vmatpush2.msra.mxu0 0.0
        %1363 = vmatprep.subr.mxu0 0.0
        %1364 = vmatpush2.msra.mxu0 0.0
        %1365 = vmatprep.subr.mxu0 0.0
        %1366 = vmatpush2.msra.mxu0 0.0
        %1367 = vmatprep.subr.mxu0 0.0
        %1368 = vmatpush2.msra.mxu0 0.0
        %1369 = vmatprep.subr.mxu0 0.0
        %1370 = vmatpush2.msra.mxu0 0.0
        %1371 = vmatprep.subr.mxu0 0.0
        %1372 = vmatpush2.msra.mxu0 0.0
        %1373 = vmatprep.mubr.f32.mxu0 0.0
        %1374 = vmatmul.mubr.f32.gmra.mxu0 %v1307
        %v1375 = vpop.f32.mrf.mxu0
        %v1376 = vadd.f32 %v1303, %v1375
        %v1377 = vpop.f32.mrf.mxu0
        %1378 = vdwg.mxu0
        %v1379 = vadd.f32 %v1204, %v1376
        %v1380 = vld [vmem:[%s13] sm:$0x1]
        %v1381 = vld [vmem:[%s14] sm:$0x1]
        %v1382 = vsel %vm587, %v1379, 0.0
        %1383 = vadd.xlane.f32.xlu0 %v1382
        %v1384 = vpop.xlane.xlu0 %1383
        %v1385 = vmul.f32 %v1384, %v1180
        %v1386 = vsub.f32 %v1379, %v1385
        %v1387 = vmul.f32 %v1386, %v1386
        %v1388 = vsel %vm587, %v1387, 0.0
        %1389 = vadd.xlane.f32.xlu0 %v1388
        %v1390 = vpop.xlane.xlu0 %1389
        %v1391 = vmul.f32 %v1390, %v1180
        %v1392 = vadd.f32 %v1391, 1e-05
        %v1393 = vrsqrt.pop %v1392
        %v1394 = vmul.f32 %v1386, %v1393
        %v1396 = vlaneseq
        %v1397 = vshrl.u32 %v1396, 7
        %v1398 = vsub.s32 0, %v1397
        %v1399 = vrot.slane %v1380, %v1398
        %v1401 = vmul.f32 %v1394, %v1399
        %v1403 = vlaneseq
        %v1404 = vshrl.u32 %v1403, 7
        %v1405 = vsub.s32 0, %v1404
        %v1406 = vrot.slane %v1381, %v1405
        %v1408 = vadd.f32 %v1401, %v1406
        %s1409 = scalar_lea.vmem %s3, 32
        %v1410 = vld [vmem:[%s1409] sm:$0xff]
        %v1411 = vld [vmem:[%s1409 + $0x8] sm:$0xff]
        %v1412 = vld [vmem:[%s1409 + $0x10] sm:$0xff]
        %v1413 = vld [vmem:[%s1409 + $0x18] sm:$0xff]
        %s1414 = scalar_lea.vmem %s4, 1
        %v1415 = vld [vmem:[%s1414] sm:$0x1]
        %v1417 = vlaneseq
        %v1418 = vshrl.u32 %v1417, 7
        %v1419 = vsub.s32 0, %v1418
        %v1420 = vrot.slane %v1415, %v1419
        %v1423 = vsel %vm587, %v1408, 0
        %1425 = vmatprep.subr.mxu0 0.0
        %1426 = vmatpush1.msra.mxu0 0.0
        %1427 = vmatprep.subr.mxu0 0.0
        %1428 = vmatpush1.msra.mxu0 0.0
        %1429 = vmatprep.subr.mxu0 0.0
        %1430 = vmatpush1.msra.mxu0 0.0
        %1431 = vmatprep.subr.mxu0 0.0
        %1432 = vmatpush1.msra.mxu0 0.0
        %1433 = vmatprep.subr.mxu0 0.0
        %1434 = vmatpush1.msra.mxu0 0.0
        %1435 = vmatprep.subr.mxu0 0.0
        %1436 = vmatpush1.msra.mxu0 0.0
        %1437 = vmatprep.subr.mxu0 0.0
        %1438 = vmatpush1.msra.mxu0 0.0
        %1439 = vmatprep.subr.mxu0 0.0
        %1440 = vmatpush1.msra.mxu0 0.0
        %1441 = vmatprep.subr.mxu0 0.0
        %1442 = vmatpush1.msra.mxu0 0.0
        %1443 = vmatprep.subr.mxu0 0.0
        %1444 = vmatpush1.msra.mxu0 0.0
        %1445 = vmatprep.subr.mxu0 0.0
        %1446 = vmatpush1.msra.mxu0 0.0
        %1447 = vmatprep.subr.mxu0 0.0
        %1448 = vmatpush1.msra.mxu0 0.0
        %1449 = vmatprep.subr.mxu0 0.0
        %1450 = vmatpush1.msra.mxu0 %v1413
        %1451 = vmatprep.subr.mxu0 0.0
        %1452 = vmatpush1.msra.mxu0 %v1412
        %1453 = vmatprep.subr.mxu0 0.0
        %1454 = vmatpush1.msra.mxu0 %v1411
        %1455 = vmatprep.subr.mxu0 0.0
        %1456 = vmatpush1.msra.mxu0 %v1410
        %1457 = vmatprep.subr.mxu0 0.0
        %1458 = vmatpush2.msra.mxu0 0.0
        %1459 = vmatprep.subr.mxu0 0.0
        %1460 = vmatpush2.msra.mxu0 0.0
        %1461 = vmatprep.subr.mxu0 0.0
        %1462 = vmatpush2.msra.mxu0 0.0
        %1463 = vmatprep.subr.mxu0 0.0
        %1464 = vmatpush2.msra.mxu0 0.0
        %1465 = vmatprep.subr.mxu0 0.0
        %1466 = vmatpush2.msra.mxu0 0.0
        %1467 = vmatprep.subr.mxu0 0.0
        %1468 = vmatpush2.msra.mxu0 0.0
        %1469 = vmatprep.subr.mxu0 0.0
        %1470 = vmatpush2.msra.mxu0 0.0
        %1471 = vmatprep.subr.mxu0 0.0
        %1472 = vmatpush2.msra.mxu0 0.0
        %1473 = vmatprep.subr.mxu0 0.0
        %1474 = vmatpush2.msra.mxu0 0.0
        %1475 = vmatprep.subr.mxu0 0.0
        %1476 = vmatpush2.msra.mxu0 0.0
        %1477 = vmatprep.subr.mxu0 0.0
        %1478 = vmatpush2.msra.mxu0 0.0
        %1479 = vmatprep.subr.mxu0 0.0
        %1480 = vmatpush2.msra.mxu0 0.0
        %1481 = vmatprep.subr.mxu0 0.0
        %1482 = vmatpush2.msra.mxu0 0.0
        %1483 = vmatprep.subr.mxu0 0.0
        %1484 = vmatpush2.msra.mxu0 0.0
        %1485 = vmatprep.subr.mxu0 0.0
        %1486 = vmatpush2.msra.mxu0 0.0
        %1487 = vmatprep.subr.mxu0 0.0
        %1488 = vmatpush2.msra.mxu0 0.0
        %1489 = vmatprep.mubr.f32.mxu0 0.0
        %1490 = vmatmul.mubr.f32.gmra.mxu0 %v1423
        %v1491 = vpop.f32.mrf.mxu0
        %v1492 = vadd.f32 %v1420, %v1491
        %v1493 = vpop.f32.mrf.mxu0
        %1494 = vdwg.mxu0
        %v1495 = vmul.f32 %v1492, 0.25
        %1497 = vrot.lane.b32.xlu0 %v1492, 96
        %v1498 = vpop.permute.xlu0 %1497
        %v1500 = vsel %vm756, %v1495, 0
        %v1502 = vsel %vm756, %v1498, 0
        %1504 = vmatprep.subr.mxu0 0.0
        %1505 = vmatpush1.xpose.msra.mxu0 0.0
        %1506 = vmatprep.subr.mxu0 0.0
        %1507 = vmatpush1.xpose.msra.mxu0 0.0
        %1508 = vmatprep.subr.mxu0 0.0
        %1509 = vmatpush1.xpose.msra.mxu0 0.0
        %1510 = vmatprep.subr.mxu0 0.0
        %1511 = vmatpush1.xpose.msra.mxu0 0.0
        %1512 = vmatprep.subr.mxu0 0.0
        %1513 = vmatpush1.xpose.msra.mxu0 0.0
        %1514 = vmatprep.subr.mxu0 0.0
        %1515 = vmatpush1.xpose.msra.mxu0 0.0
        %1516 = vmatprep.subr.mxu0 0.0
        %1517 = vmatpush1.xpose.msra.mxu0 0.0
        %1518 = vmatprep.subr.mxu0 0.0
        %1519 = vmatpush1.xpose.msra.mxu0 0.0
        %1520 = vmatprep.subr.mxu0 0.0
        %1521 = vmatpush1.xpose.msra.mxu0 0.0
        %1522 = vmatprep.subr.mxu0 0.0
        %1523 = vmatpush1.xpose.msra.mxu0 0.0
        %1524 = vmatprep.subr.mxu0 0.0
        %1525 = vmatpush1.xpose.msra.mxu0 0.0
        %1526 = vmatprep.subr.mxu0 0.0
        %1527 = vmatpush1.xpose.msra.mxu0 0.0
        %1528 = vmatprep.subr.mxu0 0.0
        %1529 = vmatpush1.xpose.msra.mxu0 0.0
        %1530 = vmatprep.subr.mxu0 0.0
        %1531 = vmatpush1.xpose.msra.mxu0 0.0
        %1532 = vmatprep.subr.mxu0 0.0
        %1533 = vmatpush1.xpose.msra.mxu0 0.0
        %1534 = vmatprep.subr.mxu0 0.0
        %1535 = vmatpush1.xpose.msra.mxu0 %v1502
        %1536 = vmatprep.subr.mxu0 0.0
        %1537 = vmatpush2.xpose.msra.mxu0 0.0
        %1538 = vmatprep.subr.mxu0 0.0
        %1539 = vmatpush2.xpose.msra.mxu0 0.0
        %1540 = vmatprep.subr.mxu0 0.0
        %1541 = vmatpush2.xpose.msra.mxu0 0.0
        %1542 = vmatprep.subr.mxu0 0.0
        %1543 = vmatpush2.xpose.msra.mxu0 0.0
        %1544 = vmatprep.subr.mxu0 0.0
        %1545 = vmatpush2.xpose.msra.mxu0 0.0
        %1546 = vmatprep.subr.mxu0 0.0
        %1547 = vmatpush2.xpose.msra.mxu0 0.0
        %1548 = vmatprep.subr.mxu0 0.0
        %1549 = vmatpush2.xpose.msra.mxu0 0.0
        %1550 = vmatprep.subr.mxu0 0.0
        %1551 = vmatpush2.xpose.msra.mxu0 0.0
        %1552 = vmatprep.subr.mxu0 0.0
        %1553 = vmatpush2.xpose.msra.mxu0 0.0
        %1554 = vmatprep.subr.mxu0 0.0
        %1555 = vmatpush2.xpose.msra.mxu0 0.0
        %1556 = vmatprep.subr.mxu0 0.0
        %1557 = vmatpush2.xpose.msra.mxu0 0.0
        %1558 = vmatprep.subr.mxu0 0.0
        %1559 = vmatpush2.xpose.msra.mxu0 0.0
        %1560 = vmatprep.subr.mxu0 0.0
        %1561 = vmatpush2.xpose.msra.mxu0 0.0
        %1562 = vmatprep.subr.mxu0 0.0
        %1563 = vmatpush2.xpose.msra.mxu0 0.0
        %1564 = vmatprep.subr.mxu0 0.0
        %1565 = vmatpush2.xpose.msra.mxu0 0.0
        %1566 = vmatprep.subr.mxu0 0.0
        %1567 = vmatpush2.xpose.msra.mxu0 0.0
        %1568 = vmatprep.mubr.f32.mxu0 0.0
        %1569 = vmatmul.mubr.f32.gmra.mxu0 %v1500
        %v1570 = vpop.f32.mrf.mxu0
        %v1571 = vadd.f32 %v667, %v1570
        %v1572 = vpop.f32.mrf.mxu0
        %1573 = vdwg.mxu0
        %v1574 = vsel %vm832, %v1571, -inf
        %1575 = vmax.xlane.f32.xlu0 %v1574
        %v1576 = vpop.xlane.xlu0 %1575
        %v1577 = vsub.f32 %v1571, %v1576
        %v1578 = vmul.f32 %v1577, 1.442695
        %v1579 = vpow.pop %v1578
        %v1580 = vsel %vm832, %v1579, 0.0
        %1581 = vadd.xlane.f32.xlu0 %v1580
        %v1582 = vpop.xlane.xlu0 %1581
        %v1583 = vrcp.pop %v1582
        %v1584 = vmul.f32 %v1579, %v1583
        %1585 = vrot.lane.b32.xlu0 %v1492, 64
        %v1586 = vpop.permute.xlu0 %1585
        %v1589 = vsel %vm832, %v1584, 0
        %1591 = vmatprep.subr.mxu0 0.0
        %1592 = vmatpush1.msra.mxu0 0.0
        %1593 = vmatprep.subr.mxu0 0.0
        %1594 = vmatpush1.msra.mxu0 0.0
        %1595 = vmatprep.subr.mxu0 0.0
        %1596 = vmatpush1.msra.mxu0 0.0
        %1597 = vmatprep.subr.mxu0 0.0
        %1598 = vmatpush1.msra.mxu0 0.0
        %1599 = vmatprep.subr.mxu0 0.0
        %1600 = vmatpush1.msra.mxu0 0.0
        %1601 = vmatprep.subr.mxu0 0.0
        %1602 = vmatpush1.msra.mxu0 0.0
        %1603 = vmatprep.subr.mxu0 0.0
        %1604 = vmatpush1.msra.mxu0 0.0
        %1605 = vmatprep.subr.mxu0 0.0
        %1606 = vmatpush1.msra.mxu0 0.0
        %1607 = vmatprep.subr.mxu0 0.0
        %1608 = vmatpush1.msra.mxu0 0.0
        %1609 = vmatprep.subr.mxu0 0.0
        %1610 = vmatpush1.msra.mxu0 0.0
        %1611 = vmatprep.subr.mxu0 0.0
        %1612 = vmatpush1.msra.mxu0 0.0
        %1613 = vmatprep.subr.mxu0 0.0
        %1614 = vmatpush1.msra.mxu0 0.0
        %1615 = vmatprep.subr.mxu0 0.0
        %1616 = vmatpush1.msra.mxu0 0.0
        %1617 = vmatprep.subr.mxu0 0.0
        %1618 = vmatpush1.msra.mxu0 0.0
        %1619 = vmatprep.subr.mxu0 0.0
        %1620 = vmatpush1.msra.mxu0 0.0
        %1621 = vmatprep.subr.mxu0 0.0
        %1622 = vmatpush1.msra.mxu0 %v1586
        %1623 = vmatprep.subr.mxu0 0.0
        %1624 = vmatpush2.msra.mxu0 0.0
        %1625 = vmatprep.subr.mxu0 0.0
        %1626 = vmatpush2.msra.mxu0 0.0
        %1627 = vmatprep.subr.mxu0 0.0
        %1628 = vmatpush2.msra.mxu0 0.0
        %1629 = vmatprep.subr.mxu0 0.0
        %1630 = vmatpush2.msra.mxu0 0.0
        %1631 = vmatprep.subr.mxu0 0.0
        %1632 = vmatpush2.msra.mxu0 0.0
        %1633 = vmatprep.subr.mxu0 0.0
        %1634 = vmatpush2.msra.mxu0 0.0
        %1635 = vmatprep.subr.mxu0 0.0
        %1636 = vmatpush2.msra.mxu0 0.0
        %1637 = vmatprep.subr.mxu0 0.0
        %1638 = vmatpush2.msra.mxu0 0.0
        %1639 = vmatprep.subr.mxu0 0.0
        %1640 = vmatpush2.msra.mxu0 0.0
        %1641 = vmatprep.subr.mxu0 0.0
        %1642 = vmatpush2.msra.mxu0 0.0
        %1643 = vmatprep.subr.mxu0 0.0
        %1644 = vmatpush2.msra.mxu0 0.0
        %1645 = vmatprep.subr.mxu0 0.0
        %1646 = vmatpush2.msra.mxu0 0.0
        %1647 = vmatprep.subr.mxu0 0.0
        %1648 = vmatpush2.msra.mxu0 0.0
        %1649 = vmatprep.subr.mxu0 0.0
        %1650 = vmatpush2.msra.mxu0 0.0
        %1651 = vmatprep.subr.mxu0 0.0
        %1652 = vmatpush2.msra.mxu0 0.0
        %1653 = vmatprep.subr.mxu0 0.0
        %1654 = vmatpush2.msra.mxu0 0.0
        %1655 = vmatprep.mubr.f32.mxu0 0.0
        %1656 = vmatmul.mubr.f32.gmra.mxu0 %v1589
        %v1657 = vpop.f32.mrf.mxu0
        %v1658 = vadd.f32 0.0, %v1657
        %v1659 = vpop.f32.mrf.mxu0
        %1660 = vdwg.mxu0
        %1661 = vrot.lane.b32.xlu0 %v1495, 112
        %v1662 = vpop.permute.xlu0 %1661
        %1663 = vrot.lane.b32.xlu0 %v1492, 80
        %v1664 = vpop.permute.xlu0 %1663
        %v1665 = vsel %vm756, %v1662, 0
        %v1667 = vsel %vm756, %v1664, 0
        %1669 = vmatprep.subr.mxu0 0.0
        %1670 = vmatpush1.xpose.msra.mxu0 0.0
        %1671 = vmatprep.subr.mxu0 0.0
        %1672 = vmatpush1.xpose.msra.mxu0 0.0
        %1673 = vmatprep.subr.mxu0 0.0
        %1674 = vmatpush1.xpose.msra.mxu0 0.0
        %1675 = vmatprep.subr.mxu0 0.0
        %1676 = vmatpush1.xpose.msra.mxu0 0.0
        %1677 = vmatprep.subr.mxu0 0.0
        %1678 = vmatpush1.xpose.msra.mxu0 0.0
        %1679 = vmatprep.subr.mxu0 0.0
        %1680 = vmatpush1.xpose.msra.mxu0 0.0
        %1681 = vmatprep.subr.mxu0 0.0
        %1682 = vmatpush1.xpose.msra.mxu0 0.0
        %1683 = vmatprep.subr.mxu0 0.0
        %1684 = vmatpush1.xpose.msra.mxu0 0.0
        %1685 = vmatprep.subr.mxu0 0.0
        %1686 = vmatpush1.xpose.msra.mxu0 0.0
        %1687 = vmatprep.subr.mxu0 0.0
        %1688 = vmatpush1.xpose.msra.mxu0 0.0
        %1689 = vmatprep.subr.mxu0 0.0
        %1690 = vmatpush1.xpose.msra.mxu0 0.0
        %1691 = vmatprep.subr.mxu0 0.0
        %1692 = vmatpush1.xpose.msra.mxu0 0.0
        %1693 = vmatprep.subr.mxu0 0.0
        %1694 = vmatpush1.xpose.msra.mxu0 0.0
        %1695 = vmatprep.subr.mxu0 0.0
        %1696 = vmatpush1.xpose.msra.mxu0 0.0
        %1697 = vmatprep.subr.mxu0 0.0
        %1698 = vmatpush1.xpose.msra.mxu0 0.0
        %1699 = vmatprep.subr.mxu0 0.0
        %1700 = vmatpush1.xpose.msra.mxu0 %v1667
        %1701 = vmatprep.subr.mxu0 0.0
        %1702 = vmatpush2.xpose.msra.mxu0 0.0
        %1703 = vmatprep.subr.mxu0 0.0
        %1704 = vmatpush2.xpose.msra.mxu0 0.0
        %1705 = vmatprep.subr.mxu0 0.0
        %1706 = vmatpush2.xpose.msra.mxu0 0.0
        %1707 = vmatprep.subr.mxu0 0.0
        %1708 = vmatpush2.xpose.msra.mxu0 0.0
        %1709 = vmatprep.subr.mxu0 0.0
        %1710 = vmatpush2.xpose.msra.mxu0 0.0
        %1711 = vmatprep.subr.mxu0 0.0
        %1712 = vmatpush2.xpose.msra.mxu0 0.0
        %1713 = vmatprep.subr.mxu0 0.0
        %1714 = vmatpush2.xpose.msra.mxu0 0.0
        %1715 = vmatprep.subr.mxu0 0.0
        %1716 = vmatpush2.xpose.msra.mxu0 0.0
        %1717 = vmatprep.subr.mxu0 0.0
        %1718 = vmatpush2.xpose.msra.mxu0 0.0
        %1719 = vmatprep.subr.mxu0 0.0
        %1720 = vmatpush2.xpose.msra.mxu0 0.0
        %1721 = vmatprep.subr.mxu0 0.0
        %1722 = vmatpush2.xpose.msra.mxu0 0.0
        %1723 = vmatprep.subr.mxu0 0.0
        %1724 = vmatpush2.xpose.msra.mxu0 0.0
        %1725 = vmatprep.subr.mxu0 0.0
        %1726 = vmatpush2.xpose.msra.mxu0 0.0
        %1727 = vmatprep.subr.mxu0 0.0
        %1728 = vmatpush2.xpose.msra.mxu0 0.0
        %1729 = vmatprep.subr.mxu0 0.0
        %1730 = vmatpush2.xpose.msra.mxu0 0.0
        %1731 = vmatprep.subr.mxu0 0.0
        %1732 = vmatpush2.xpose.msra.mxu0 0.0
        %1733 = vmatprep.mubr.f32.mxu0 0.0
        %1734 = vmatmul.mubr.f32.gmra.mxu0 %v1665
        %v1735 = vpop.f32.mrf.mxu0
        %v1736 = vadd.f32 %v667, %v1735
        %v1737 = vpop.f32.mrf.mxu0
        %1738 = vdwg.mxu0
        %v1739 = vsel %vm832, %v1736, -inf
        %1740 = vmax.xlane.f32.xlu0 %v1739
        %v1741 = vpop.xlane.xlu0 %1740
        %v1742 = vsub.f32 %v1736, %v1741
        %v1743 = vmul.f32 %v1742, 1.442695
        %v1744 = vpow.pop %v1743
        %v1745 = vsel %vm832, %v1744, 0.0
        %1746 = vadd.xlane.f32.xlu0 %v1745
        %v1747 = vpop.xlane.xlu0 %1746
        %v1748 = vrcp.pop %v1747
        %v1749 = vmul.f32 %v1744, %v1748
        %1750 = vrot.lane.b32.xlu0 %v1492, 48
        %v1751 = vpop.permute.xlu0 %1750
        %v1754 = vsel %vm832, %v1749, 0
        %1756 = vmatprep.subr.mxu0 0.0
        %1757 = vmatpush1.msra.mxu0 0.0
        %1758 = vmatprep.subr.mxu0 0.0
        %1759 = vmatpush1.msra.mxu0 0.0
        %1760 = vmatprep.subr.mxu0 0.0
        %1761 = vmatpush1.msra.mxu0 0.0
        %1762 = vmatprep.subr.mxu0 0.0
        %1763 = vmatpush1.msra.mxu0 0.0
        %1764 = vmatprep.subr.mxu0 0.0
        %1765 = vmatpush1.msra.mxu0 0.0
        %1766 = vmatprep.subr.mxu0 0.0
        %1767 = vmatpush1.msra.mxu0 0.0
        %1768 = vmatprep.subr.mxu0 0.0
        %1769 = vmatpush1.msra.mxu0 0.0
        %1770 = vmatprep.subr.mxu0 0.0
        %1771 = vmatpush1.msra.mxu0 0.0
        %1772 = vmatprep.subr.mxu0 0.0
        %1773 = vmatpush1.msra.mxu0 0.0
        %1774 = vmatprep.subr.mxu0 0.0
        %1775 = vmatpush1.msra.mxu0 0.0
        %1776 = vmatprep.subr.mxu0 0.0
        %1777 = vmatpush1.msra.mxu0 0.0
        %1778 = vmatprep.subr.mxu0 0.0
        %1779 = vmatpush1.msra.mxu0 0.0
        %1780 = vmatprep.subr.mxu0 0.0
        %1781 = vmatpush1.msra.mxu0 0.0
        %1782 = vmatprep.subr.mxu0 0.0
        %1783 = vmatpush1.msra.mxu0 0.0
        %1784 = vmatprep.subr.mxu0 0.0
        %1785 = vmatpush1.msra.mxu0 0.0
        %1786 = vmatprep.subr.mxu0 0.0
        %1787 = vmatpush1.msra.mxu0 %v1751
        %1788 = vmatprep.subr.mxu0 0.0
        %1789 = vmatpush2.msra.mxu0 0.0
        %1790 = vmatprep.subr.mxu0 0.0
        %1791 = vmatpush2.msra.mxu0 0.0
        %1792 = vmatprep.subr.mxu0 0.0
        %1793 = vmatpush2.msra.mxu0 0.0
        %1794 = vmatprep.subr.mxu0 0.0
        %1795 = vmatpush2.msra.mxu0 0.0
        %1796 = vmatprep.subr.mxu0 0.0
        %1797 = vmatpush2.msra.mxu0 0.0
        %1798 = vmatprep.subr.mxu0 0.0
        %1799 = vmatpush2.msra.mxu0 0.0
        %1800 = vmatprep.subr.mxu0 0.0
        %1801 = vmatpush2.msra.mxu0 0.0
        %1802 = vmatprep.subr.mxu0 0.0
        %1803 = vmatpush2.msra.mxu0 0.0
        %1804 = vmatprep.subr.mxu0 0.0
        %1805 = vmatpush2.msra.mxu0 0.0
        %1806 = vmatprep.subr.mxu0 0.0
        %1807 = vmatpush2.msra.mxu0 0.0
        %1808 = vmatprep.subr.mxu0 0.0
        %1809 = vmatpush2.msra.mxu0 0.0
        %1810 = vmatprep.subr.mxu0 0.0
        %1811 = vmatpush2.msra.mxu0 0.0
        %1812 = vmatprep.subr.mxu0 0.0
        %1813 = vmatpush2.msra.mxu0 0.0
        %1814 = vmatprep.subr.mxu0 0.0
        %1815 = vmatpush2.msra.mxu0 0.0
        %1816 = vmatprep.subr.mxu0 0.0
        %1817 = vmatpush2.msra.mxu0 0.0
        %1818 = vmatprep.subr.mxu0 0.0
        %1819 = vmatpush2.msra.mxu0 0.0
        %1820 = vmatprep.mubr.f32.mxu0 0.0
        %1821 = vmatmul.mubr.f32.gmra.mxu0 %v1754
        %v1822 = vpop.f32.mrf.mxu0
        %v1823 = vadd.f32 0.0, %v1822
        %v1824 = vpop.f32.mrf.mxu0
        %1825 = vdwg.mxu0
        %1827 = vrot.lane.b32.xlu0 %v1823, 16
        %v1828 = vpop.permute.xlu0 %1827
        %v1830 = vsel %vm756, %v1658, %v1828
        %s1831 = scalar_lea.vmem %s5, 32
        %v1832 = vld [vmem:[%s1831] sm:$0xff]
        %v1833 = vld [vmem:[%s1831 + $0x8] sm:$0xff]
        %v1834 = vld [vmem:[%s1831 + $0x10] sm:$0xff]
        %v1835 = vld [vmem:[%s1831 + $0x18] sm:$0xff]
        %s1836 = scalar_lea.vmem %s6, 1
        %v1837 = vld [vmem:[%s1836] sm:$0x1]
        %v1839 = vlaneseq
        %v1840 = vshrl.u32 %v1839, 7
        %v1841 = vsub.s32 0, %v1840
        %v1842 = vrot.slane %v1837, %v1841
        %v1845 = vsel %vm587, %v1830, 0
        %1847 = vmatprep.subr.mxu0 0.0
        %1848 = vmatpush1.msra.mxu0 0.0
        %1849 = vmatprep.subr.mxu0 0.0
        %1850 = vmatpush1.msra.mxu0 0.0
        %1851 = vmatprep.subr.mxu0 0.0
        %1852 = vmatpush1.msra.mxu0 0.0
        %1853 = vmatprep.subr.mxu0 0.0
        %1854 = vmatpush1.msra.mxu0 0.0
        %1855 = vmatprep.subr.mxu0 0.0
        %1856 = vmatpush1.msra.mxu0 0.0
        %1857 = vmatprep.subr.mxu0 0.0
        %1858 = vmatpush1.msra.mxu0 0.0
        %1859 = vmatprep.subr.mxu0 0.0
        %1860 = vmatpush1.msra.mxu0 0.0
        %1861 = vmatprep.subr.mxu0 0.0
        %1862 = vmatpush1.msra.mxu0 0.0
        %1863 = vmatprep.subr.mxu0 0.0
        %1864 = vmatpush1.msra.mxu0 0.0
        %1865 = vmatprep.subr.mxu0 0.0
        %1866 = vmatpush1.msra.mxu0 0.0
        %1867 = vmatprep.subr.mxu0 0.0
        %1868 = vmatpush1.msra.mxu0 0.0
        %1869 = vmatprep.subr.mxu0 0.0
        %1870 = vmatpush1.msra.mxu0 0.0
        %1871 = vmatprep.subr.mxu0 0.0
        %1872 = vmatpush1.msra.mxu0 %v1835
        %1873 = vmatprep.subr.mxu0 0.0
        %1874 = vmatpush1.msra.mxu0 %v1834
        %1875 = vmatprep.subr.mxu0 0.0
        %1876 = vmatpush1.msra.mxu0 %v1833
        %1877 = vmatprep.subr.mxu0 0.0
        %1878 = vmatpush1.msra.mxu0 %v1832
        %1879 = vmatprep.subr.mxu0 0.0
        %1880 = vmatpush2.msra.mxu0 0.0
        %1881 = vmatprep.subr.mxu0 0.0
        %1882 = vmatpush2.msra.mxu0 0.0
        %1883 = vmatprep.subr.mxu0 0.0
        %1884 = vmatpush2.msra.mxu0 0.0
        %1885 = vmatprep.subr.mxu0 0.0
        %1886 = vmatpush2.msra.mxu0 0.0
        %1887 = vmatprep.subr.mxu0 0.0
        %1888 = vmatpush2.msra.mxu0 0.0
        %1889 = vmatprep.subr.mxu0 0.0
        %1890 = vmatpush2.msra.mxu0 0.0
        %1891 = vmatprep.subr.mxu0 0.0
        %1892 = vmatpush2.msra.mxu0 0.0
        %1893 = vmatprep.subr.mxu0 0.0
        %1894 = vmatpush2.msra.mxu0 0.0
        %1895 = vmatprep.subr.mxu0 0.0
        %1896 = vmatpush2.msra.mxu0 0.0
        %1897 = vmatprep.subr.mxu0 0.0
        %1898 = vmatpush2.msra.mxu0 0.0
        %1899 = vmatprep.subr.mxu0 0.0
        %1900 = vmatpush2.msra.mxu0 0.0
        %1901 = vmatprep.subr.mxu0 0.0
        %1902 = vmatpush2.msra.mxu0 0.0
        %1903 = vmatprep.subr.mxu0 0.0
        %1904 = vmatpush2.msra.mxu0 0.0
        %1905 = vmatprep.subr.mxu0 0.0
        %1906 = vmatpush2.msra.mxu0 0.0
        %1907 = vmatprep.subr.mxu0 0.0
        %1908 = vmatpush2.msra.mxu0 0.0
        %1909 = vmatprep.subr.mxu0 0.0
        %1910 = vmatpush2.msra.mxu0 0.0
        %1911 = vmatprep.mubr.f32.mxu0 0.0
        %1912 = vmatmul.mubr.f32.gmra.mxu0 %v1845
        %v1913 = vpop.f32.mrf.mxu0
        %v1914 = vadd.f32 %v1842, %v1913
        %v1915 = vpop.f32.mrf.mxu0
        %1916 = vdwg.mxu0
        %v1917 = vadd.f32 %v1408, %v1914
        %s1918 = scalar_lea.vmem %s11, 1
        %v1919 = vld [vmem:[%s1918] sm:$0x1]
        %s1920 = scalar_lea.vmem %s12, 1
        %v1921 = vld [vmem:[%s1920] sm:$0x1]
        %v1922 = vsel %vm587, %v1917, 0.0
        %1923 = vadd.xlane.f32.xlu0 %v1922
        %v1924 = vpop.xlane.xlu0 %1923
        %v1925 = vmul.f32 %v1924, %v1180
        %v1926 = vsub.f32 %v1917, %v1925
        %v1927 = vmul.f32 %v1926, %v1926
        %v1928 = vsel %vm587, %v1927, 0.0
        %1929 = vadd.xlane.f32.xlu0 %v1928
        %v1930 = vpop.xlane.xlu0 %1929
        %v1931 = vmul.f32 %v1930, %v1180
        %v1932 = vadd.f32 %v1931, 1e-05
        %v1933 = vrsqrt.pop %v1932
        %v1934 = vmul.f32 %v1926, %v1933
        %v1936 = vlaneseq
        %v1937 = vshrl.u32 %v1936, 7
        %v1938 = vsub.s32 0, %v1937
        %v1939 = vrot.slane %v1919, %v1938
        %v1941 = vmul.f32 %v1934, %v1939
        %v1943 = vlaneseq
        %v1944 = vshrl.u32 %v1943, 7
        %v1945 = vsub.s32 0, %v1944
        %v1946 = vrot.slane %v1921, %v1945
        %v1948 = vadd.f32 %v1941, %v1946
        %s1949 = scalar_lea.vmem %s7, 32
        %v1950 = vld [vmem:[%s1949] sm:$0xff]
        %v1951 = vld [vmem:[%s1949 + $0x8] sm:$0xff]
        %v1952 = vld [vmem:[%s1949 + $0x10] sm:$0xff]
        %v1953 = vld [vmem:[%s1949 + $0x18] sm:$0xff]
        %s1954 = scalar_lea.vmem [#allocation2], 1
        %v1955 = vld [vmem:[%s1954] sm:$0x1]
        %v1957 = vlaneseq
        %v1958 = vshrl.u32 %v1957, 7
        %v1959 = vsub.s32 0, %v1958
        %v1960 = vrot.slane %v1955, %v1959
        %v1963 = vsel %vm587, %v1948, 0
        %1965 = vmatprep.subr.mxu0 0.0
        %1966 = vmatpush1.msra.mxu0 0.0
        %1967 = vmatprep.subr.mxu0 0.0
        %1968 = vmatpush1.msra.mxu0 0.0
        %1969 = vmatprep.subr.mxu0 0.0
        %1970 = vmatpush1.msra.mxu0 0.0
        %1971 = vmatprep.subr.mxu0 0.0
        %1972 = vmatpush1.msra.mxu0 0.0
        %1973 = vmatprep.subr.mxu0 0.0
        %1974 = vmatpush1.msra.mxu0 0.0
        %1975 = vmatprep.subr.mxu0 0.0
        %1976 = vmatpush1.msra.mxu0 0.0
        %1977 = vmatprep.subr.mxu0 0.0
        %1978 = vmatpush1.msra.mxu0 0.0
        %1979 = vmatprep.subr.mxu0 0.0
        %1980 = vmatpush1.msra.mxu0 0.0
        %1981 = vmatprep.subr.mxu0 0.0
        %1982 = vmatpush1.msra.mxu0 0.0
        %1983 = vmatprep.subr.mxu0 0.0
        %1984 = vmatpush1.msra.mxu0 0.0
        %1985 = vmatprep.subr.mxu0 0.0
        %1986 = vmatpush1.msra.mxu0 0.0
        %1987 = vmatprep.subr.mxu0 0.0
        %1988 = vmatpush1.msra.mxu0 0.0
        %1989 = vmatprep.subr.mxu0 0.0
        %1990 = vmatpush1.msra.mxu0 %v1953
        %1991 = vmatprep.subr.mxu0 0.0
        %1992 = vmatpush1.msra.mxu0 %v1952
        %1993 = vmatprep.subr.mxu0 0.0
        %1994 = vmatpush1.msra.mxu0 %v1951
        %1995 = vmatprep.subr.mxu0 0.0
        %1996 = vmatpush1.msra.mxu0 %v1950
        %1997 = vmatprep.subr.mxu0 0.0
        %1998 = vmatpush2.msra.mxu0 0.0
        %1999 = vmatprep.subr.mxu0 0.0
        %2000 = vmatpush2.msra.mxu0 0.0
        %2001 = vmatprep.subr.mxu0 0.0
        %2002 = vmatpush2.msra.mxu0 0.0
        %2003 = vmatprep.subr.mxu0 0.0
        %2004 = vmatpush2.msra.mxu0 0.0
        %2005 = vmatprep.subr.mxu0 0.0
        %2006 = vmatpush2.msra.mxu0 0.0
        %2007 = vmatprep.subr.mxu0 0.0
        %2008 = vmatpush2.msra.mxu0 0.0
        %2009 = vmatprep.subr.mxu0 0.0
        %2010 = vmatpush2.msra.mxu0 0.0
        %2011 = vmatprep.subr.mxu0 0.0
        %2012 = vmatpush2.msra.mxu0 0.0
        %2013 = vmatprep.subr.mxu0 0.0
        %2014 = vmatpush2.msra.mxu0 0.0
        %2015 = vmatprep.subr.mxu0 0.0
        %2016 = vmatpush2.msra.mxu0 0.0
        %2017 = vmatprep.subr.mxu0 0.0
        %2018 = vmatpush2.msra.mxu0 0.0
        %2019 = vmatprep.subr.mxu0 0.0
        %2020 = vmatpush2.msra.mxu0 0.0
        %2021 = vmatprep.subr.mxu0 0.0
        %2022 = vmatpush2.msra.mxu0 0.0
        %2023 = vmatprep.subr.mxu0 0.0
        %2024 = vmatpush2.msra.mxu0 0.0
        %2025 = vmatprep.subr.mxu0 0.0
        %2026 = vmatpush2.msra.mxu0 0.0
        %2027 = vmatprep.subr.mxu0 0.0
        %2028 = vmatpush2.msra.mxu0 0.0
        %2029 = vmatprep.mubr.f32.mxu0 0.0
        %2030 = vmatmul.mubr.f32.gmra.mxu0 %v1963
        %v2031 = vpop.f32.mrf.mxu0
        %v2032 = vadd.f32 %v1960, %v2031
        %v2033 = vpop.f32.mrf.mxu0
        %2034 = vdwg.mxu0
        %v2035 = vmax.f32 %v2032, 0.0
        %s2036 = scalar_lea.vmem %s9, 64
        %v2037 = vld [vmem:[%s2036] sm:$0xff]
        %v2038 = vld [vmem:[%s2036 + $0x8] sm:$0xff]
        %v2039 = vld [vmem:[%s2036 + $0x10] sm:$0xff]
        %v2040 = vld [vmem:[%s2036 + $0x18] sm:$0xff]
        %v2041 = vld [vmem:[%s2036 + $0x20] sm:$0xff]
        %v2042 = vld [vmem:[%s2036 + $0x28] sm:$0xff]
        %v2043 = vld [vmem:[%s2036 + $0x30] sm:$0xff]
        %v2044 = vld [vmem:[%s2036 + $0x38] sm:$0xff]
        %s2045 = scalar_lea.vmem [#allocation4], 1
        %v2046 = vld [vmem:[%s2045] sm:$0x1]
        %v2048 = vlaneseq
        %v2049 = vshrl.u32 %v2048, 7
        %v2050 = vsub.s32 0, %v2049
        %v2051 = vrot.slane %v2046, %v2050
        %v2054 = vsel %vm1305, %v2035, 0
        %2056 = vmatprep.subr.mxu0 0.0
        %2057 = vmatpush1.msra.mxu0 0.0
        %2058 = vmatprep.subr.mxu0 0.0
        %2059 = vmatpush1.msra.mxu0 0.0
        %2060 = vmatprep.subr.mxu0 0.0
        %2061 = vmatpush1.msra.mxu0 0.0
        %2062 = vmatprep.subr.mxu0 0.0
        %2063 = vmatpush1.msra.mxu0 0.0
        %2064 = vmatprep.subr.mxu0 0.0
        %2065 = vmatpush1.msra.mxu0 0.0
        %2066 = vmatprep.subr.mxu0 0.0
        %2067 = vmatpush1.msra.mxu0 0.0
        %2068 = vmatprep.subr.mxu0 0.0
        %2069 = vmatpush1.msra.mxu0 0.0
        %2070 = vmatprep.subr.mxu0 0.0
        %2071 = vmatpush1.msra.mxu0 0.0
        %2072 = vmatprep.subr.mxu0 0.0
        %2073 = vmatpush1.msra.mxu0 %v2044
        %2074 = vmatprep.subr.mxu0 0.0
        %2075 = vmatpush1.msra.mxu0 %v2043
        %2076 = vmatprep.subr.mxu0 0.0
        %2077 = vmatpush1.msra.mxu0 %v2042
        %2078 = vmatprep.subr.mxu0 0.0
        %2079 = vmatpush1.msra.mxu0 %v2041
        %2080 = vmatprep.subr.mxu0 0.0
        %2081 = vmatpush1.msra.mxu0 %v2040
        %2082 = vmatprep.subr.mxu0 0.0
        %2083 = vmatpush1.msra.mxu0 %v2039
        %2084 = vmatprep.subr.mxu0 0.0
        %2085 = vmatpush1.msra.mxu0 %v2038
        %2086 = vmatprep.subr.mxu0 0.0
        %2087 = vmatpush1.msra.mxu0 %v2037
        %2088 = vmatprep.subr.mxu0 0.0
        %2089 = vmatpush2.msra.mxu0 0.0
        %2090 = vmatprep.subr.mxu0 0.0
        %2091 = vmatpush2.msra.mxu0 0.0
        %2092 = vmatprep.subr.mxu0 0.0
        %2093 = vmatpush2.msra.mxu0 0.0
        %2094 = vmatprep.subr.mxu0 0.0
        %2095 = vmatpush2.msra.mxu0 0.0
        %2096 = vmatprep.subr.mxu0 0.0
        %2097 = vmatpush2.msra.mxu0 0.0
        %2098 = vmatprep.subr.mxu0 0.0
        %2099 = vmatpush2.msra.mxu0 0.0
        %2100 = vmatprep.subr.mxu0 0.0
        %2101 = vmatpush2.msra.mxu0 0.0
        %2102 = vmatprep.subr.mxu0 0.0
        %2103 = vmatpush2.msra.mxu0 0.0
        %2104 = vmatprep.subr.mxu0 0.0
        %2105 = vmatpush2.msra.mxu0 0.0
        %2106 = vmatprep.subr.mxu0 0.0
        %2107 = vmatpush2.msra.mxu0 0.0
        %2108 = vmatprep.subr.mxu0 0.0
        %2109 = vmatpush2.msra.mxu0 0.0
        %2110 = vmatprep.subr.mxu0 0.0
        %2111 = vmatpush2.msra.mxu0 0.0
        %2112 = vmatprep.subr.mxu0 0.0
        %2113 = vmatpush2.msra.mxu0 0.0
        %2114 = vmatprep.subr.mxu0 0.0
        %2115 = vmatpush2.msra.mxu0 0.0
        %2116 = vmatprep.subr.mxu0 0.0
        %2117 = vmatpush2.msra.mxu0 0.0
        %2118 = vmatprep.subr.mxu0 0.0
        %2119 = vmatpush2.msra.mxu0 0.0
        %2120 = vmatprep.mubr.f32.mxu0 0.0
        %2121 = vmatmul.mubr.f32.gmra.mxu0 %v2054
        %v2122 = vpop.f32.mrf.mxu0
        %v2123 = vadd.f32 %v2051, %v2122
        %v2124 = vpop.f32.mrf.mxu0
        %2125 = vdwg.mxu0
        %v2126 = vadd.f32 %v1948, %v2123
        %s2127 = scalar_lea.vmem %s13, 1
        %v2128 = vld [vmem:[%s2127] sm:$0x1]
        %s2129 = scalar_lea.vmem %s14, 1
        %v2130 = vld [vmem:[%s2129] sm:$0x1]
        %v2131 = vsel %vm587, %v2126, 0.0
        %2132 = vadd.xlane.f32.xlu0 %v2131
        %v2133 = vpop.xlane.xlu0 %2132
        %v2134 = vmul.f32 %v2133, %v1180
        %v2135 = vsub.f32 %v2126, %v2134
        %v2136 = vmul.f32 %v2135, %v2135
        %v2137 = vsel %vm587, %v2136, 0.0
        %2138 = vadd.xlane.f32.xlu0 %v2137
        %v2139 = vpop.xlane.xlu0 %2138
        %v2140 = vmul.f32 %v2139, %v1180
        %v2141 = vadd.f32 %v2140, 1e-05
        %v2142 = vrsqrt.pop %v2141
        %v2143 = vmul.f32 %v2135, %v2142
        %v2145 = vlaneseq
        %v2146 = vshrl.u32 %v2145, 7
        %v2147 = vsub.s32 0, %v2146
        %v2148 = vrot.slane %v2128, %v2147
        %v2150 = vmul.f32 %v2143, %v2148
        %v2152 = vlaneseq
        %v2153 = vshrl.u32 %v2152, 7
        %v2154 = vsub.s32 0, %v2153
        %v2155 = vrot.slane %v2130, %v2154
        %v2157 = vadd.f32 %v2150, %v2155
        %v2158 = vld [vmem:[%s15] sm:$0xff]
        %v2159 = vld [vmem:[%s15 + $0x8] sm:$0xff]
        %v2160 = vld [vmem:[%s15 + $0x10] sm:$0xff]
        %v2161 = vld [vmem:[%s15 + $0x18] sm:$0xff]
        %v2162 = vld [vmem:[%s16] sm:$0x1]
        %v2164 = vlaneseq
        %v2165 = vshrl.u32 %v2164, 7
        %v2166 = vsub.s32 0, %v2165
        %v2167 = vrot.slane %v2162, %v2166
        %v2170 = vsel %vm587, %v2157, 0
        %2172 = vmatprep.subr.mxu0 0.0
        %2173 = vmatpush1.msra.mxu0 0.0
        %2174 = vmatprep.subr.mxu0 0.0
        %2175 = vmatpush1.msra.mxu0 0.0
        %2176 = vmatprep.subr.mxu0 0.0
        %2177 = vmatpush1.msra.mxu0 0.0
        %2178 = vmatprep.subr.mxu0 0.0
        %2179 = vmatpush1.msra.mxu0 0.0
        %2180 = vmatprep.subr.mxu0 0.0
        %2181 = vmatpush1.msra.mxu0 0.0
        %2182 = vmatprep.subr.mxu0 0.0
        %2183 = vmatpush1.msra.mxu0 0.0
        %2184 = vmatprep.subr.mxu0 0.0
        %2185 = vmatpush1.msra.mxu0 0.0
        %2186 = vmatprep.subr.mxu0 0.0
        %2187 = vmatpush1.msra.mxu0 0.0
        %2188 = vmatprep.subr.mxu0 0.0
        %2189 = vmatpush1.msra.mxu0 0.0
        %2190 = vmatprep.subr.mxu0 0.0
        %2191 = vmatpush1.msra.mxu0 0.0
        %2192 = vmatprep.subr.mxu0 0.0
        %2193 = vmatpush1.msra.mxu0 0.0
        %2194 = vmatprep.subr.mxu0 0.0
        %2195 = vmatpush1.msra.mxu0 0.0
        %2196 = vmatprep.subr.mxu0 0.0
        %2197 = vmatpush1.msra.mxu0 %v2161
        %2198 = vmatprep.subr.mxu0 0.0
        %2199 = vmatpush1.msra.mxu0 %v2160
        %2200 = vmatprep.subr.mxu0 0.0
        %2201 = vmatpush1.msra.mxu0 %v2159
        %2202 = vmatprep.subr.mxu0 0.0
        %2203 = vmatpush1.msra.mxu0 %v2158
        %2204 = vmatprep.subr.mxu0 0.0
        %2205 = vmatpush2.msra.mxu0 0.0
        %2206 = vmatprep.subr.mxu0 0.0
        %2207 = vmatpush2.msra.mxu0 0.0
        %2208 = vmatprep.subr.mxu0 0.0
        %2209 = vmatpush2.msra.mxu0 0.0
        %2210 = vmatprep.subr.mxu0 0.0
        %2211 = vmatpush2.msra.mxu0 0.0
        %2212 = vmatprep.subr.mxu0 0.0
        %2213 = vmatpush2.msra.mxu0 0.0
        %2214 = vmatprep.subr.mxu0 0.0
        %2215 = vmatpush2.msra.mxu0 0.0
        %2216 = vmatprep.subr.mxu0 0.0
        %2217 = vmatpush2.msra.mxu0 0.0
        %2218 = vmatprep.subr.mxu0 0.0
        %2219 = vmatpush2.msra.mxu0 0.0
        %2220 = vmatprep.subr.mxu0 0.0
        %2221 = vmatpush2.msra.mxu0 0.0
        %2222 = vmatprep.subr.mxu0 0.0
        %2223 = vmatpush2.msra.mxu0 0.0
        %2224 = vmatprep.subr.mxu0 0.0
        %2225 = vmatpush2.msra.mxu0 0.0
        %2226 = vmatprep.subr.mxu0 0.0
        %2227 = vmatpush2.msra.mxu0 0.0
        %2228 = vmatprep.subr.mxu0 0.0
        %2229 = vmatpush2.msra.mxu0 0.0
        %2230 = vmatprep.subr.mxu0 0.0
        %2231 = vmatpush2.msra.mxu0 0.0
        %2232 = vmatprep.subr.mxu0 0.0
        %2233 = vmatpush2.msra.mxu0 0.0
        %2234 = vmatprep.subr.mxu0 0.0
        %2235 = vmatpush2.msra.mxu0 0.0
        %2236 = vmatprep.mubr.f32.mxu0 0.0
        %2237 = vmatmul.mubr.f32.gmra.mxu0 %v2170
        %v2238 = vpop.f32.mrf.mxu0
        %v2239 = vadd.f32 %v2167, %v2238
        %v2240 = vpop.f32.mrf.mxu0
        %2241 = vdwg.mxu0
        %2242 = vst.msk [vmem:[%s573] sm:$0xff] %vm587, %v2239
        %p2243 = scmp.lt.s32.totalorder %s30, 1
        %s2244 = scalar_select %p2243, %s30, 1
        %s2245 = smul.addr %s2244, 8
        %s2246 = scalar_lea.vmem %s17, %s2245
        // Predicated region
        $region97: #{transformer_forward.1} parent=87 // pred_check
          %p2247 = pneg %p410
        $region98: #{transformer_forward.1} parent=87 // pred_check_branch
          %2249 = sbr.rel (%p2247) target = $region100
        $region99: #{transformer_forward.1} parent=87 // pred_region
          _
        $region100: #{transformer_forward.1} parent=87 // pred_fallthru
          _
      $region88: #{transformer_forward.1} parent=5 // pred_fallthru
        _
      %p2250 = scmp.le.s32.totalorder 2, %s25
      // Predicated region
      $region101: #{transformer_forward.1} parent=5 // pred_check
        %p2251 = pneg %p2250
      $region102: #{transformer_forward.1} parent=5 // pred_check_branch
        %2253 = sbr.rel (%p2251) target = $region104
      $region103: #{transformer_forward.1} parent=5 // pred_region
        %s2254 = ssub.s32 %s25, 2
        // Predicated region
        $region105: #{transformer_forward.1} parent=103 // pred_check
          %p2255 = pneg %p416
        $region106: #{transformer_forward.1} parent=103 // pred_check_branch
          %2257 = sbr.rel (%p2255) target = $region108
        $region107: #{transformer_forward.1} parent=103 // pred_region
          %p2258 = scmp.lt.s32.totalorder %s31, 1
          %s2259 = scalar_select %p2258, %s31, 1
          %s2260 = smul.addr %s2259, 8
          %s2261 = scalar_lea.vmem %s17, %s2260
        $region108: #{transformer_forward.1} parent=103 // pred_fallthru
          _
      $region104: #{transformer_forward.1} parent=5 // pred_fallthru
        _
    $region6: #{transformer_forward.1} parent=1 // loop_footer
      %s29 = sadd.s32 1, %s25
    $region7: #{transformer_forward.1} parent=1 // loop_footer_branch
      %24 = sbr.rel target = $region3
    $region8: #{transformer_forward.1} parent=1 // loop_exit
      _
    %2262 = vsyncpa [#allocation3], 1
    %s2263 = scalar_lea.sflag [#allocation3], 1
    %2264 = vsyncpa %s2263, 1
    %2265 = vsyncpa [#allocation5], 1

</llo_original>
